<compile_context>
chip_gen: v7x
topology: tpu7x:2x2x1
jax: 0.10.0
libtpu: 0.0.40
codegen_flags: <defaults>
</compile_context>

<pallas_src>
import jax
import jax.numpy as jnp
from jax import lax
from jax.experimental import pallas as pl
from jax.experimental.pallas import tpu as pltpu


def _vmem_budget_bytes():
    """~3/4 of per-core VMEM capacity, with a conservative (v7x-sized) fallback."""
    try:
        cap = int(pltpu.get_tpu_info().vmem_capacity_bytes)
    except Exception:
        cap = 64 * 1024 * 1024
    return max(32 * 1024 * 1024, min((cap * 3) // 4, 96 * 1024 * 1024))


def _make_kernel(*, K, pad, L, Nb, Cin, Cout, use_adjust, compute_dtype, out_dtype):
    """Fused ResidualBlock kernel for one (Nb, C, L) batch tile, native (C, L) layout."""
    cdt = compute_dtype

    def kernel(*refs):
        if use_adjust:
            (x_ref, w1_ref, b1_ref, w2_ref, b2_ref,
             wadj_ref, badj_ref, out_ref) = refs
        else:
            (x_ref, w1_ref, b1_ref, w2_ref, b2_ref, out_ref) = refs
            wadj_ref = badj_ref = None

        # Hoisted once per grid step: lane-index iota + the K-1 "same"-padding
        # masks.  Shifts are purely along the lane axis, so no `% L` is needed.
        shift_masks = {}
        if K > 1:
            lane = lax.broadcasted_iota(jnp.int32, (1, L), 1)
            for k in range(K):
                s = k - pad
                if s != 0 and s not in shift_masks:
                    shift_masks[s] = jnp.logical_and(lane + s >= 0, lane + s < L)

        def shift(v, s):
            # v: (C, L) -> u with u[:, l] = v[:, l + s], zero outside [0, L).
            if s == 0:
                return v
            rolled = pltpu.roll(v, shift=(-s) % L, axis=1)   # XLU, no VMEM traffic
            return jnp.where(shift_masks[s], rolled, jnp.zeros_like(rolled))

        def im2col(v):
            # (C, L) -> (K*C, L): K lane-shifted copies stacked along contraction.
            return jnp.concatenate([shift(v, k - pad) for k in range(K)], axis=0)

        w1 = w1_ref[...]          # (Cout, K*Cin)   compute dtype (pre-cast)
        w2 = w2_ref[...]          # (Cout, K*Cout)
        b1 = b1_ref[...]          # (Cout, 1) f32
        b2 = b2_ref[...]          # (Cout, 1) f32
        if use_adjust:
            wadj = wadj_ref[...]  # (Cout, Cin)
            badj = badj_ref[...]  # (Cout, 1) f32

        for n in range(Nb):                       # static unroll over batch tile
            xn = x_ref[n]                         # (Cin, L), compute dtype
            # conv1 + ReLU : one im2col MXU dot, f32 accumulation, lane dim = L
            h = jnp.dot(w1, im2col(xn), preferred_element_type=jnp.float32) + b1
            h = jnp.maximum(h, 0.0)               # (Cout, L) f32
            # conv2
            o = jnp.dot(w2, im2col(h.astype(cdt)),
                        preferred_element_type=jnp.float32) + b2
            # shortcut
            if use_adjust:                        # 1x1 adjust_channels
                ident = jnp.dot(wadj, xn, preferred_element_type=jnp.float32) + badj
            else:                                 # pure identity
                ident = xn.astype(jnp.float32)
            # residual add + ReLU, straight lane-dense store in native NCL layout
            out_ref[n] = jnp.maximum(o + ident, 0.0).astype(out_dtype)

    return kernel


def residual_block(x, conv1_w, conv1_b, conv2_w, conv2_b,
                   adjust_w=None, adjust_b=None, *,
                   stride=1, padding=1, batch_tile=16,
                   compute_dtype=jnp.float32):
    """Fused ResidualBlock forward.

    x        : (N, Cin, L) float32, native Conv1d NCL layout (no pre-pad/transpose)
    conv1_w  : (Cout, Cin, K)   conv1_b : (Cout,)      (PyTorch Conv1d layout)
    conv2_w  : (Cout, Cout, K)  conv2_b : (Cout,)
    adjust_w : (Cout, Cin, 1)   adjust_b: (Cout,)      (only used when Cin != Cout)
    returns  : (N, Cout, L) in x's dtype
    """
    N, Cin, L = x.shape
    Cout, _, K = conv1_w.shape
    # TODO(synk): stride > 1 shrinks the sequence and breaks the residual add
    # (exactly as in the PyTorch module); only stride=1 is supported.
    assert stride == 1, "stride must be 1 so the residual add is shape-consistent"
    assert (L + 2 * padding - K) // stride + 1 == L, \
        "padding must preserve length for the residual add"

    use_adjust = Cin != Cout
    if use_adjust and (adjust_w is None or adjust_b is None):
        raise ValueError("adjust_channels weights required when Cin != Cout")

    out_dtype = x.dtype
    cdt = jnp.dtype(compute_dtype)

    # Batch-tile: keep >= 2 grid steps when N >= 2 (both v7x TensorCores busy),
    # pad the batch dim (cheap) when N isn't a multiple of the tile.
    Nb = max(1, min(int(batch_tile), pl.cdiv(N, 2) if N >= 2 else 1))
    Np = pl.cdiv(N, Nb) * Nb
    x_k = x.astype(cdt)
    if Np != N:
        x_k = jnp.pad(x_k, ((0, Np - N), (0, 0), (0, 0)))

    # Host-side weight prep: PyTorch OIK -> im2col matrices (Cout, K*C),
    # pre-cast to the compute dtype; biases stay f32 (added to f32 accumulators).
    w1_mat = jnp.transpose(conv1_w, (0, 2, 1)).reshape(Cout, K * Cin).astype(cdt)
    w2_mat = jnp.transpose(conv2_w, (0, 2, 1)).reshape(Cout, K * Cout).astype(cdt)
    b1 = conv1_b.reshape(Cout, 1).astype(jnp.float32)
    b2 = conv2_b.reshape(Cout, 1).astype(jnp.float32)

    kernel = _make_kernel(K=K, pad=padding, L=L, Nb=Nb, Cin=Cin, Cout=Cout,
                          use_adjust=use_adjust, compute_dtype=cdt,
                          out_dtype=out_dtype)

    args = [x_k, w1_mat, b1, w2_mat, b2]
    if use_adjust:
        wadj = adjust_w[:, :, 0].astype(cdt)                 # (Cout, Cin)
        badj = adjust_b.reshape(Cout, 1).astype(jnp.float32)
        args += [wadj, badj]

    flops = 2 * N * L * (K * Cin * Cout + K * Cout * Cout
                         + (Cin * Cout if use_adjust else 0))
    bytes_accessed = (int(x_k.size) * x_k.dtype.itemsize
                      + Np * Cout * L * jnp.dtype(out_dtype).itemsize
                      + sum(int(a.size) * a.dtype.itemsize for a in args[1:]))
    cost = pl.CostEstimate(flops=int(flops), transcendentals=0,
                           bytes_accessed=int(bytes_accessed))

    vmem_bytes = _vmem_budget_bytes()

    def _call(weight_buffering):
        def wspec(shape):
            kwargs = {}
            if weight_buffering is not None:
                kwargs["pipeline_mode"] = weight_buffering
            return pl.BlockSpec(shape, lambda i: (0,) * len(shape), **kwargs)

        in_specs = [pl.BlockSpec((Nb, Cin, L), lambda i: (i, 0, 0)),
                    wspec((Cout, K * Cin)),
                    wspec((Cout, 1)),
                    wspec((Cout, K * Cout)),
                    wspec((Cout, 1))]
        if use_adjust:
            in_specs += [wspec((Cout, Cin)), wspec((Cout, 1))]

        return pl.pallas_call(
            kernel,
            out_shape=jax.ShapeDtypeStruct((Np, Cout, L), out_dtype),
            grid=(Np // Nb,),
            in_specs=in_specs,
            out_specs=pl.BlockSpec((Nb, Cout, L), lambda i: (i, 0, 0)),
            compiler_params=pltpu.CompilerParams(
                dimension_semantics=("parallel",),      # shards across v7x's 2 TCs
                vmem_limit_bytes=vmem_bytes),
            cost_estimate=cost,
        )(*args)

    try:
        # Constant weights (index_map always (0, 0)): single-buffered.
        out = jax.block_until_ready(_call(pl.Buffered(1)))
    except Exception:
        # Fallback: default (double) buffering if this build rejects Buffered(1).
        out = _call(None)

    return out if Np == N else out[:N]


# ---------------- pure-JAX reference (mirrors the PyTorch module) -------------
def _conv1d_ref(x, w_oik, b, stride, padding):
    y = lax.conv_general_dilated(x, w_oik, window_strides=(stride,),
                                 padding=[(padding, padding)],
                                 dimension_numbers=("NCH", "OIH", "NCH"))
    return y + b[None, :, None]


def residual_block_ref(x, w1, b1, w2, b2, wadj=None, badj=None, *, stride, padding):
    out = jnp.maximum(_conv1d_ref(x, w1, b1, stride, padding), 0.0)
    out = _conv1d_ref(out, w2, b2, stride, padding)
    identity = x if wadj is None else _conv1d_ref(x, wadj, badj, 1, 0)
    return jnp.maximum(out + identity, 0.0)


if __name__ == "__main__":
    key = jax.random.PRNGKey(0)
    ks = jax.random.split(key, 8)

    # Case 1: in_channels != out_channels -> 1x1 adjust_channels path,
    # batch=4 with batch_tile=2 -> a 2-step parallel grid.
    N, Cin, Cout, L, K, pad = 4, 4, 8, 16, 3, 1
    x = jax.random.normal(ks[0], (N, Cin, L), jnp.float32)
    w1 = 0.2 * jax.random.normal(ks[1], (Cout, Cin, K), jnp.float32)
    b1 = 0.1 * jax.random.normal(ks[2], (Cout,), jnp.float32)
    w2 = 0.2 * jax.random.normal(ks[3], (Cout, Cout, K), jnp.float32)
    b2 = 0.1 * jax.random.normal(ks[4], (Cout,), jnp.float32)
    wa = 0.2 * jax.random.normal(ks[5], (Cout, Cin, 1), jnp.float32)
    ba = 0.1 * jax.random.normal(ks[6], (Cout,), jnp.float32)

    out = residual_block(x, w1, b1, w2, b2, wa, ba,
                         stride=1, padding=pad, batch_tile=2)
    out = jax.block_until_ready(out)
    ref = residual_block_ref(x, w1, b1, w2, b2, wa, ba, stride=1, padding=pad)
    assert out.shape == (N, Cout, L)
    assert jnp.allclose(out, ref, atol=1e-5, rtol=1e-5), "adjust-path mismatch"

    # Case 1b: bf16 compute-dtype path (MXU-native on all generations); looser
    # tolerance since inputs/weights are rounded to bf16 before the MXU.
    out_bf16 = residual_block(x, w1, b1, w2, b2, wa, ba,
                              stride=1, padding=pad, batch_tile=2,
                              compute_dtype=jnp.bfloat16)
    out_bf16 = jax.block_until_ready(out_bf16)
    assert jnp.allclose(out_bf16.astype(jnp.float32), ref, atol=0.1, rtol=0.1), \
        "bf16-path mismatch"

    # Case 2: in_channels == out_channels -> pure identity shortcut
    # (kernel variant without the adjust weights / DMA).
    C = 8
    x2 = jax.random.normal(ks[7], (2, C, L), jnp.float32)
    w1b = 0.2 * jax.random.normal(ks[1], (C, C, K), jnp.float32)
    b1b = 0.1 * jax.random.normal(ks[2], (C,), jnp.float32)
    w2b = 0.2 * jax.random.normal(ks[3], (C, C, K), jnp.float32)
    b2b = 0.1 * jax.random.normal(ks[4], (C,), jnp.float32)

    out2 = residual_block(x2, w1b, b1b, w2b, b2b,
                          stride=1, padding=pad, batch_tile=2)
    out2 = jax.block_until_ready(out2)
    ref2 = residual_block_ref(x2, w1b, b1b, w2b, b2b, stride=1, padding=pad)
    assert out2.shape == (2, C, L)
    assert jnp.allclose(out2, ref2, atol=1e-5, rtol=1e-5), "identity-path mismatch"

    print("KERNEL_OK")
</pallas_src>

<mosaic_0001>
module attributes {stable_mosaic.version = 11 : i64} {
  func.func @kernel(%arg0: i32, %arg1: memref<2x4x16xf32, #tpu.memory_space<vmem>>, %arg2: memref<8x12xf32, #tpu.memory_space<vmem>>, %arg3: memref<8x1xf32, #tpu.memory_space<vmem>>, %arg4: memref<8x24xf32, #tpu.memory_space<vmem>>, %arg5: memref<8x1xf32, #tpu.memory_space<vmem>>, %arg6: memref<8x4xf32, #tpu.memory_space<vmem>>, %arg7: memref<8x1xf32, #tpu.memory_space<vmem>>, %arg8: memref<2x8x16xf32, #tpu.memory_space<vmem>>) attributes {dimension_semantics = [#tpu.dimension_semantics<parallel>], iteration_bounds = array<i64: 2>, scalar_prefetch = 0 : i64, scratch_operands = 0 : i64, tpu.core_type = #tpu.core_type<tc>, window_params = [{transform_indices = @transform_0, window_bounds = array<i64: 2, 4, 16>}, {pipeline_mode = #tpu.pipeline_mode<synchronous>, transform_indices = @transform_1, window_bounds = array<i64: 8, 12>}, {pipeline_mode = #tpu.pipeline_mode<synchronous>, transform_indices = @transform_2, window_bounds = array<i64: 8, 1>}, {pipeline_mode = #tpu.pipeline_mode<synchronous>, transform_indices = @transform_3, window_bounds = array<i64: 8, 24>}, {pipeline_mode = #tpu.pipeline_mode<synchronous>, transform_indices = @transform_4, window_bounds = array<i64: 8, 1>}, {pipeline_mode = #tpu.pipeline_mode<synchronous>, transform_indices = @transform_5, window_bounds = array<i64: 8, 4>}, {pipeline_mode = #tpu.pipeline_mode<synchronous>, transform_indices = @transform_6, window_bounds = array<i64: 8, 1>}, {transform_indices = @transform_7, window_bounds = array<i64: 2, 8, 16>}]} {
    %0 = tpu.iota {dimensions = array<i32: 1>} : vector<1x16xi32>
    %c-1_i32 = arith.constant -1 : i32
    %1 = vector.broadcast %c-1_i32 : i32 to vector<1x16xi32>
    %2 = arith.addi %0, %1 : vector<1x16xi32>
    %c0_i32 = arith.constant 0 : i32
    %3 = vector.broadcast %c0_i32 : i32 to vector<1x16xi32>
    %4 = arith.cmpi sge, %2, %3 : vector<1x16xi32>
    %c-1_i32_0 = arith.constant -1 : i32
    %5 = vector.broadcast %c-1_i32_0 : i32 to vector<1x16xi32>
    %6 = arith.addi %0, %5 : vector<1x16xi32>
    %c16_i32 = arith.constant 16 : i32
    %7 = vector.broadcast %c16_i32 : i32 to vector<1x16xi32>
    %8 = arith.cmpi slt, %6, %7 : vector<1x16xi32>
    %9 = arith.andi %4, %8 : vector<1x16xi1>
    %c1_i32 = arith.constant 1 : i32
    %10 = vector.broadcast %c1_i32 : i32 to vector<1x16xi32>
    %11 = arith.addi %0, %10 : vector<1x16xi32>
    %c0_i32_1 = arith.constant 0 : i32
    %12 = vector.broadcast %c0_i32_1 : i32 to vector<1x16xi32>
    %13 = arith.cmpi sge, %11, %12 : vector<1x16xi32>
    %c1_i32_2 = arith.constant 1 : i32
    %14 = vector.broadcast %c1_i32_2 : i32 to vector<1x16xi32>
    %15 = arith.addi %0, %14 : vector<1x16xi32>
    %c16_i32_3 = arith.constant 16 : i32
    %16 = vector.broadcast %c16_i32_3 : i32 to vector<1x16xi32>
    %17 = arith.cmpi slt, %15, %16 : vector<1x16xi32>
    %18 = arith.andi %13, %17 : vector<1x16xi1>
    %c0 = arith.constant 0 : index
    %c0_4 = arith.constant 0 : index
    %19 = vector.load %arg2[%c0, %c0_4] : memref<8x12xf32, #tpu.memory_space<vmem>>, vector<8x12xf32>
    %c0_5 = arith.constant 0 : index
    %c0_6 = arith.constant 0 : index
    %20 = vector.load %arg4[%c0_5, %c0_6] : memref<8x24xf32, #tpu.memory_space<vmem>>, vector<8x24xf32>
    %c0_7 = arith.constant 0 : index
    %c0_8 = arith.constant 0 : index
    %21 = vector.load %arg3[%c0_7, %c0_8] : memref<8x1xf32, #tpu.memory_space<vmem>>, vector<8x1xf32>
    %c0_9 = arith.constant 0 : index
    %c0_10 = arith.constant 0 : index
    %22 = vector.load %arg5[%c0_9, %c0_10] : memref<8x1xf32, #tpu.memory_space<vmem>>, vector<8x1xf32>
    %c0_11 = arith.constant 0 : index
    %c0_12 = arith.constant 0 : index
    %23 = vector.load %arg6[%c0_11, %c0_12] : memref<8x4xf32, #tpu.memory_space<vmem>>, vector<8x4xf32>
    %c0_13 = arith.constant 0 : index
    %c0_14 = arith.constant 0 : index
    %24 = vector.load %arg7[%c0_13, %c0_14] : memref<8x1xf32, #tpu.memory_space<vmem>>, vector<8x1xf32>
    %c0_15 = arith.constant 0 : index
    %c0_16 = arith.constant 0 : index
    %c0_17 = arith.constant 0 : index
    %25 = vector.load %arg1[%c0_15, %c0_16, %c0_17] : memref<2x4x16xf32, #tpu.memory_space<vmem>>, vector<1x4x16xf32>
    %26 = vector.shape_cast %25 : vector<1x4x16xf32> to vector<4x16xf32>
    %c1_i32_18 = arith.constant 1 : i32
    %27 = tpu.dynamic_rotate %26 by %c1_i32_18 dim 1 : vector<4x16xf32>, i32 -> vector<4x16xf32>
    %cst = arith.constant 0.000000e+00 : f32
    %28 = vector.broadcast %cst : f32 to vector<4x16xf32>
    %29 = vector.shape_cast %9 : vector<1x16xi1> to vector<1x16xi1>
    %30 = vector.broadcast %29 : vector<1x16xi1> to vector<4x16xi1>
    %31 = arith.select %30, %27, %28 : vector<4x16xi1>, vector<4x16xf32>
    %c15_i32 = arith.constant 15 : i32
    %32 = tpu.dynamic_rotate %26 by %c15_i32 dim 1 : vector<4x16xf32>, i32 -> vector<4x16xf32>
    %cst_19 = arith.constant 0.000000e+00 : f32
    %33 = vector.broadcast %cst_19 : f32 to vector<4x16xf32>
    %34 = vector.shape_cast %18 : vector<1x16xi1> to vector<1x16xi1>
    %35 = vector.broadcast %34 : vector<1x16xi1> to vector<4x16xi1>
    %36 = arith.select %35, %32, %33 : vector<4x16xi1>, vector<4x16xf32>
    %37 = tpu.concatenate %31, %26, %36 in 0 : vector<4x16xf32>, vector<4x16xf32>, vector<4x16xf32> -> vector<12x16xf32>
    %cst_20 = arith.constant dense<0.000000e+00> : vector<8x16xf32>
    %38 = tpu.matmul %19, %37, %cst_20 {dimension_numbers = #tpu.dot_dimension_numbers<[1], [0], [0], [1], [0, 0, 1, 1], [], []>} : vector<8x12xf32>, vector<12x16xf32>, vector<8x16xf32> -> vector<8x16xf32>
    %39 = vector.broadcast %21 : vector<8x1xf32> to vector<8x16xf32>
    %40 = arith.addf %38, %39 : vector<8x16xf32>
    %cst_21 = arith.constant 0.000000e+00 : f32
    %41 = vector.broadcast %cst_21 : f32 to vector<8x16xf32>
    %42 = arith.maximumf %40, %41 : vector<8x16xf32>
    %c1_i32_22 = arith.constant 1 : i32
    %43 = tpu.dynamic_rotate %42 by %c1_i32_22 dim 1 : vector<8x16xf32>, i32 -> vector<8x16xf32>
    %cst_23 = arith.constant 0.000000e+00 : f32
    %44 = vector.broadcast %cst_23 : f32 to vector<8x16xf32>
    %45 = vector.shape_cast %9 : vector<1x16xi1> to vector<1x16xi1>
    %46 = vector.broadcast %45 : vector<1x16xi1> to vector<8x16xi1>
    %47 = arith.select %46, %43, %44 : vector<8x16xi1>, vector<8x16xf32>
    %c15_i32_24 = arith.constant 15 : i32
    %48 = tpu.dynamic_rotate %42 by %c15_i32_24 dim 1 : vector<8x16xf32>, i32 -> vector<8x16xf32>
    %cst_25 = arith.constant 0.000000e+00 : f32
    %49 = vector.broadcast %cst_25 : f32 to vector<8x16xf32>
    %50 = vector.shape_cast %18 : vector<1x16xi1> to vector<1x16xi1>
    %51 = vector.broadcast %50 : vector<1x16xi1> to vector<8x16xi1>
    %52 = arith.select %51, %48, %49 : vector<8x16xi1>, vector<8x16xf32>
    %53 = tpu.concatenate %47, %42, %52 in 0 : vector<8x16xf32>, vector<8x16xf32>, vector<8x16xf32> -> vector<24x16xf32>
    %cst_26 = arith.constant dense<0.000000e+00> : vector<8x16xf32>
    %54 = tpu.matmul %20, %53, %cst_26 {dimension_numbers = #tpu.dot_dimension_numbers<[1], [0], [0], [1], [0, 0, 1, 1], [], []>} : vector<8x24xf32>, vector<24x16xf32>, vector<8x16xf32> -> vector<8x16xf32>
    %55 = vector.broadcast %22 : vector<8x1xf32> to vector<8x16xf32>
    %56 = arith.addf %54, %55 : vector<8x16xf32>
    %cst_27 = arith.constant dense<0.000000e+00> : vector<8x16xf32>
    %57 = tpu.matmul %23, %26, %cst_27 {dimension_numbers = #tpu.dot_dimension_numbers<[1], [0], [0], [1], [0, 0, 1, 1], [], []>} : vector<8x4xf32>, vector<4x16xf32>, vector<8x16xf32> -> vector<8x16xf32>
    %58 = vector.broadcast %24 : vector<8x1xf32> to vector<8x16xf32>
    %59 = arith.addf %57, %58 : vector<8x16xf32>
    %60 = arith.addf %56, %59 : vector<8x16xf32>
    %cst_28 = arith.constant 0.000000e+00 : f32
    %61 = vector.broadcast %cst_28 : f32 to vector<8x16xf32>
    %62 = arith.maximumf %60, %61 : vector<8x16xf32>
    %c0_29 = arith.constant 0 : index
    %c0_30 = arith.constant 0 : index
    %c0_31 = arith.constant 0 : index
    %63 = vector.load %arg8[%c0_29, %c0_30, %c0_31] : memref<2x8x16xf32, #tpu.memory_space<vmem>>, vector<1x8x16xf32>
    %64 = vector.shape_cast %63 : vector<1x8x16xf32> to vector<8x16xf32>
    %65 = vector.shape_cast %62 : vector<8x16xf32> to vector<1x8x16xf32>
    tpu.vector_store %arg8[%c0_29, %c0_30, %c0_31], %65 {strides = array<i32>} : memref<2x8x16xf32, #tpu.memory_space<vmem>>, vector<1x8x16xf32>,
    %c1 = arith.constant 1 : index
    %c0_32 = arith.constant 0 : index
    %c0_33 = arith.constant 0 : index
    %66 = vector.load %arg1[%c1, %c0_32, %c0_33] : memref<2x4x16xf32, #tpu.memory_space<vmem>>, vector<1x4x16xf32>
    %67 = vector.shape_cast %66 : vector<1x4x16xf32> to vector<4x16xf32>
    %c1_i32_34 = arith.constant 1 : i32
    %68 = tpu.dynamic_rotate %67 by %c1_i32_34 dim 1 : vector<4x16xf32>, i32 -> vector<4x16xf32>
    %cst_35 = arith.constant 0.000000e+00 : f32
    %69 = vector.broadcast %cst_35 : f32 to vector<4x16xf32>
    %70 = vector.shape_cast %9 : vector<1x16xi1> to vector<1x16xi1>
    %71 = vector.broadcast %70 : vector<1x16xi1> to vector<4x16xi1>
    %72 = arith.select %71, %68, %69 : vector<4x16xi1>, vector<4x16xf32>
    %c15_i32_36 = arith.constant 15 : i32
    %73 = tpu.dynamic_rotate %67 by %c15_i32_36 dim 1 : vector<4x16xf32>, i32 -> vector<4x16xf32>
    %cst_37 = arith.constant 0.000000e+00 : f32
    %74 = vector.broadcast %cst_37 : f32 to vector<4x16xf32>
    %75 = vector.shape_cast %18 : vector<1x16xi1> to vector<1x16xi1>
    %76 = vector.broadcast %75 : vector<1x16xi1> to vector<4x16xi1>
    %77 = arith.select %76, %73, %74 : vector<4x16xi1>, vector<4x16xf32>
    %78 = tpu.concatenate %72, %67, %77 in 0 : vector<4x16xf32>, vector<4x16xf32>, vector<4x16xf32> -> vector<12x16xf32>
    %cst_38 = arith.constant dense<0.000000e+00> : vector<8x16xf32>
    %79 = tpu.matmul %19, %78, %cst_38 {dimension_numbers = #tpu.dot_dimension_numbers<[1], [0], [0], [1], [0, 0, 1, 1], [], []>} : vector<8x12xf32>, vector<12x16xf32>, vector<8x16xf32> -> vector<8x16xf32>
    %80 = vector.broadcast %21 : vector<8x1xf32> to vector<8x16xf32>
    %81 = arith.addf %79, %80 : vector<8x16xf32>
    %cst_39 = arith.constant 0.000000e+00 : f32
    %82 = vector.broadcast %cst_39 : f32 to vector<8x16xf32>
    %83 = arith.maximumf %81, %82 : vector<8x16xf32>
    %c1_i32_40 = arith.constant 1 : i32
    %84 = tpu.dynamic_rotate %83 by %c1_i32_40 dim 1 : vector<8x16xf32>, i32 -> vector<8x16xf32>
    %cst_41 = arith.constant 0.000000e+00 : f32
    %85 = vector.broadcast %cst_41 : f32 to vector<8x16xf32>
    %86 = vector.shape_cast %9 : vector<1x16xi1> to vector<1x16xi1>
    %87 = vector.broadcast %86 : vector<1x16xi1> to vector<8x16xi1>
    %88 = arith.select %87, %84, %85 : vector<8x16xi1>, vector<8x16xf32>
    %c15_i32_42 = arith.constant 15 : i32
    %89 = tpu.dynamic_rotate %83 by %c15_i32_42 dim 1 : vector<8x16xf32>, i32 -> vector<8x16xf32>
    %cst_43 = arith.constant 0.000000e+00 : f32
    %90 = vector.broadcast %cst_43 : f32 to vector<8x16xf32>
    %91 = vector.shape_cast %18 : vector<1x16xi1> to vector<1x16xi1>
    %92 = vector.broadcast %91 : vector<1x16xi1> to vector<8x16xi1>
    %93 = arith.select %92, %89, %90 : vector<8x16xi1>, vector<8x16xf32>
    %94 = tpu.concatenate %88, %83, %93 in 0 : vector<8x16xf32>, vector<8x16xf32>, vector<8x16xf32> -> vector<24x16xf32>
    %cst_44 = arith.constant dense<0.000000e+00> : vector<8x16xf32>
    %95 = tpu.matmul %20, %94, %cst_44 {dimension_numbers = #tpu.dot_dimension_numbers<[1], [0], [0], [1], [0, 0, 1, 1], [], []>} : vector<8x24xf32>, vector<24x16xf32>, vector<8x16xf32> -> vector<8x16xf32>
    %96 = vector.broadcast %22 : vector<8x1xf32> to vector<8x16xf32>
    %97 = arith.addf %95, %96 : vector<8x16xf32>
    %cst_45 = arith.constant dense<0.000000e+00> : vector<8x16xf32>
    %98 = tpu.matmul %23, %67, %cst_45 {dimension_numbers = #tpu.dot_dimension_numbers<[1], [0], [0], [1], [0, 0, 1, 1], [], []>} : vector<8x4xf32>, vector<4x16xf32>, vector<8x16xf32> -> vector<8x16xf32>
    %99 = vector.broadcast %24 : vector<8x1xf32> to vector<8x16xf32>
    %100 = arith.addf %98, %99 : vector<8x16xf32>
    %101 = arith.addf %97, %100 : vector<8x16xf32>
    %cst_46 = arith.constant 0.000000e+00 : f32
    %102 = vector.broadcast %cst_46 : f32 to vector<8x16xf32>
    %103 = arith.maximumf %101, %102 : vector<8x16xf32>
    %c1_47 = arith.constant 1 : index
    %c0_48 = arith.constant 0 : index
    %c0_49 = arith.constant 0 : index
    %104 = vector.load %arg8[%c1_47, %c0_48, %c0_49] : memref<2x8x16xf32, #tpu.memory_space<vmem>>, vector<1x8x16xf32>
    %105 = vector.shape_cast %104 : vector<1x8x16xf32> to vector<8x16xf32>
    %106 = vector.shape_cast %103 : vector<8x16xf32> to vector<1x8x16xf32>
    tpu.vector_store %arg8[%c1_47, %c0_48, %c0_49], %106 {strides = array<i32>} : memref<2x8x16xf32, #tpu.memory_space<vmem>>, vector<1x8x16xf32>,
    return
  }
  func.func @transform_0(%arg0: i32) -> (i32, i32, i32) {
    %c0_i32 = arith.constant 0 : i32
    %c0_i32_0 = arith.constant 0 : i32
    %c0_i32_1 = arith.constant 0 : i32
    return %arg0, %c0_i32, %c0_i32_0 : i32, i32, i32
  }
  func.func @transform_1(%arg0: i32) -> (i32, i32) {
    %c0_i32 = arith.constant 0 : i32
    %c0_i32_0 = arith.constant 0 : i32
    %c0_i32_1 = arith.constant 0 : i32
    return %c0_i32, %c0_i32_0 : i32, i32
  }
  func.func @transform_2(%arg0: i32) -> (i32, i32) {
    %c0_i32 = arith.constant 0 : i32
    %c0_i32_0 = arith.constant 0 : i32
    %c0_i32_1 = arith.constant 0 : i32
    return %c0_i32, %c0_i32_0 : i32, i32
  }
  func.func @transform_3(%arg0: i32) -> (i32, i32) {
    %c0_i32 = arith.constant 0 : i32
    %c0_i32_0 = arith.constant 0 : i32
    %c0_i32_1 = arith.constant 0 : i32
    return %c0_i32, %c0_i32_0 : i32, i32
  }
  func.func @transform_4(%arg0: i32) -> (i32, i32) {
    %c0_i32 = arith.constant 0 : i32
    %c0_i32_0 = arith.constant 0 : i32
    %c0_i32_1 = arith.constant 0 : i32
    return %c0_i32, %c0_i32_0 : i32, i32
  }
  func.func @transform_5(%arg0: i32) -> (i32, i32) {
    %c0_i32 = arith.constant 0 : i32
    %c0_i32_0 = arith.constant 0 : i32
    %c0_i32_1 = arith.constant 0 : i32
    return %c0_i32, %c0_i32_0 : i32, i32
  }
  func.func @transform_6(%arg0: i32) -> (i32, i32) {
    %c0_i32 = arith.constant 0 : i32
    %c0_i32_0 = arith.constant 0 : i32
    %c0_i32_1 = arith.constant 0 : i32
    return %c0_i32, %c0_i32_0 : i32, i32
  }
  func.func @transform_7(%arg0: i32) -> (i32, i32, i32) {
    %c0_i32 = arith.constant 0 : i32
    %c0_i32_0 = arith.constant 0 : i32
    %c0_i32_1 = arith.constant 0 : i32
    return %arg0, %c0_i32, %c0_i32_0 : i32, i32, i32
  }
}

module attributes {stable_mosaic.version = 11 : i64} {
  func.func @kernel(%arg0: i32, %arg1: memref<2x4x16xf32, #tpu.memory_space<vmem>>, %arg2: memref<8x12xf32, #tpu.memory_space<vmem>>, %arg3: memref<8x1xf32, #tpu.memory_space<vmem>>, %arg4: memref<8x24xf32, #tpu.memory_space<vmem>>, %arg5: memref<8x1xf32, #tpu.memory_space<vmem>>, %arg6: memref<8x4xf32, #tpu.memory_space<vmem>>, %arg7: memref<8x1xf32, #tpu.memory_space<vmem>>, %arg8: memref<2x8x16xf32, #tpu.memory_space<vmem>>) attributes {dimension_semantics = [#tpu.dimension_semantics<parallel>], iteration_bounds = array<i64: 2>, scalar_prefetch = 0 : i64, scratch_operands = 0 : i64, tpu.core_type = #tpu.core_type<tc>, window_params = [{transform_indices = @transform_0, window_bounds = array<i64: 2, 4, 16>}, {pipeline_mode = #tpu.pipeline_mode<synchronous>, transform_indices = @transform_1, window_bounds = array<i64: 8, 12>}, {pipeline_mode = #tpu.pipeline_mode<synchronous>, transform_indices = @transform_2, window_bounds = array<i64: 8, 1>}, {pipeline_mode = #tpu.pipeline_mode<synchronous>, transform_indices = @transform_3, window_bounds = array<i64: 8, 24>}, {pipeline_mode = #tpu.pipeline_mode<synchronous>, transform_indices = @transform_4, window_bounds = array<i64: 8, 1>}, {pipeline_mode = #tpu.pipeline_mode<synchronous>, transform_indices = @transform_5, window_bounds = array<i64: 8, 4>}, {pipeline_mode = #tpu.pipeline_mode<synchronous>, transform_indices = @transform_6, window_bounds = array<i64: 8, 1>}, {transform_indices = @transform_7, window_bounds = array<i64: 2, 8, 16>}]} {
    %0 = tpu.iota {dimensions = array<i32: 1>} : vector<1x16xi32>
    %c-1_i32 = arith.constant -1 : i32
    %1 = vector.broadcast %c-1_i32 : i32 to vector<1x16xi32>
    %2 = arith.addi %0, %1 : vector<1x16xi32>
    %c0_i32 = arith.constant 0 : i32
    %3 = vector.broadcast %c0_i32 : i32 to vector<1x16xi32>
    %4 = arith.cmpi sge, %2, %3 : vector<1x16xi32>
    %c-1_i32_0 = arith.constant -1 : i32
    %5 = vector.broadcast %c-1_i32_0 : i32 to vector<1x16xi32>
    %6 = arith.addi %0, %5 : vector<1x16xi32>
    %c16_i32 = arith.constant 16 : i32
    %7 = vector.broadcast %c16_i32 : i32 to vector<1x16xi32>
    %8 = arith.cmpi slt, %6, %7 : vector<1x16xi32>
    %9 = arith.andi %4, %8 : vector<1x16xi1>
    %c1_i32 = arith.constant 1 : i32
    %10 = vector.broadcast %c1_i32 : i32 to vector<1x16xi32>
    %11 = arith.addi %0, %10 : vector<1x16xi32>
    %c0_i32_1 = arith.constant 0 : i32
    %12 = vector.broadcast %c0_i32_1 : i32 to vector<1x16xi32>
    %13 = arith.cmpi sge, %11, %12 : vector<1x16xi32>
    %c1_i32_2 = arith.constant 1 : i32
    %14 = vector.broadcast %c1_i32_2 : i32 to vector<1x16xi32>
    %15 = arith.addi %0, %14 : vector<1x16xi32>
    %c16_i32_3 = arith.constant 16 : i32
    %16 = vector.broadcast %c16_i32_3 : i32 to vector<1x16xi32>
    %17 = arith.cmpi slt, %15, %16 : vector<1x16xi32>
    %18 = arith.andi %13, %17 : vector<1x16xi1>
    %c0 = arith.constant 0 : index
    %c0_4 = arith.constant 0 : index
    %19 = vector.load %arg2[%c0, %c0_4] : memref<8x12xf32, #tpu.memory_space<vmem>>, vector<8x12xf32>
    %c0_5 = arith.constant 0 : index
    %c0_6 = arith.constant 0 : index
    %20 = vector.load %arg4[%c0_5, %c0_6] : memref<8x24xf32, #tpu.memory_space<vmem>>, vector<8x24xf32>
    %c0_7 = arith.constant 0 : index
    %c0_8 = arith.constant 0 : index
    %21 = vector.load %arg3[%c0_7, %c0_8] : memref<8x1xf32, #tpu.memory_space<vmem>>, vector<8x1xf32>
    %c0_9 = arith.constant 0 : index
    %c0_10 = arith.constant 0 : index
    %22 = vector.load %arg5[%c0_9, %c0_10] : memref<8x1xf32, #tpu.memory_space<vmem>>, vector<8x1xf32>
    %c0_11 = arith.constant 0 : index
    %c0_12 = arith.constant 0 : index
    %23 = vector.load %arg6[%c0_11, %c0_12] : memref<8x4xf32, #tpu.memory_space<vmem>>, vector<8x4xf32>
    %c0_13 = arith.constant 0 : index
    %c0_14 = arith.constant 0 : index
    %24 = vector.load %arg7[%c0_13, %c0_14] : memref<8x1xf32, #tpu.memory_space<vmem>>, vector<8x1xf32>
    %c0_15 = arith.constant 0 : index
    %c0_16 = arith.constant 0 : index
    %c0_17 = arith.constant 0 : index
    %25 = vector.load %arg1[%c0_15, %c0_16, %c0_17] : memref<2x4x16xf32, #tpu.memory_space<vmem>>, vector<1x4x16xf32>
    %26 = vector.shape_cast %25 : vector<1x4x16xf32> to vector<4x16xf32>
    %c1_i32_18 = arith.constant 1 : i32
    %27 = tpu.dynamic_rotate %26 by %c1_i32_18 dim 1 : vector<4x16xf32>, i32 -> vector<4x16xf32>
    %cst = arith.constant 0.000000e+00 : f32
    %28 = vector.broadcast %cst : f32 to vector<4x16xf32>
    %29 = vector.shape_cast %9 : vector<1x16xi1> to vector<1x16xi1>
    %30 = vector.broadcast %29 : vector<1x16xi1> to vector<4x16xi1>
    %31 = arith.select %30, %27, %28 : vector<4x16xi1>, vector<4x16xf32>
    %c15_i32 = arith.constant 15 : i32
    %32 = tpu.dynamic_rotate %26 by %c15_i32 dim 1 : vector<4x16xf32>, i32 -> vector<4x16xf32>
    %cst_19 = arith.constant 0.000000e+00 : f32
    %33 = vector.broadcast %cst_19 : f32 to vector<4x16xf32>
    %34 = vector.shape_cast %18 : vector<1x16xi1> to vector<1x16xi1>
    %35 = vector.broadcast %34 : vector<1x16xi1> to vector<4x16xi1>
    %36 = arith.select %35, %32, %33 : vector<4x16xi1>, vector<4x16xf32>
    %37 = tpu.concatenate %31, %26, %36 in 0 : vector<4x16xf32>, vector<4x16xf32>, vector<4x16xf32> -> vector<12x16xf32>
    %cst_20 = arith.constant dense<0.000000e+00> : vector<8x16xf32>
    %38 = tpu.matmul %19, %37, %cst_20 {dimension_numbers = #tpu.dot_dimension_numbers<[1], [0], [0], [1], [0, 0, 1, 1], [], []>} : vector<8x12xf32>, vector<12x16xf32>, vector<8x16xf32> -> vector<8x16xf32>
    %39 = vector.broadcast %21 : vector<8x1xf32> to vector<8x16xf32>
    %40 = arith.addf %38, %39 : vector<8x16xf32>
    %cst_21 = arith.constant 0.000000e+00 : f32
    %41 = vector.broadcast %cst_21 : f32 to vector<8x16xf32>
    %42 = arith.maximumf %40, %41 : vector<8x16xf32>
    %c1_i32_22 = arith.constant 1 : i32
    %43 = tpu.dynamic_rotate %42 by %c1_i32_22 dim 1 : vector<8x16xf32>, i32 -> vector<8x16xf32>
    %cst_23 = arith.constant 0.000000e+00 : f32
    %44 = vector.broadcast %cst_23 : f32 to vector<8x16xf32>
    %45 = vector.shape_cast %9 : vector<1x16xi1> to vector<1x16xi1>
    %46 = vector.broadcast %45 : vector<1x16xi1> to vector<8x16xi1>
    %47 = arith.select %46, %43, %44 : vector<8x16xi1>, vector<8x16xf32>
    %c15_i32_24 = arith.constant 15 : i32
    %48 = tpu.dynamic_rotate %42 by %c15_i32_24 dim 1 : vector<8x16xf32>, i32 -> vector<8x16xf32>
    %cst_25 = arith.constant 0.000000e+00 : f32
    %49 = vector.broadcast %cst_25 : f32 to vector<8x16xf32>
    %50 = vector.shape_cast %18 : vector<1x16xi1> to vector<1x16xi1>
    %51 = vector.broadcast %50 : vector<1x16xi1> to vector<8x16xi1>
    %52 = arith.select %51, %48, %49 : vector<8x16xi1>, vector<8x16xf32>
    %53 = tpu.concatenate %47, %42, %52 in 0 : vector<8x16xf32>, vector<8x16xf32>, vector<8x16xf32> -> vector<24x16xf32>
    %cst_26 = arith.constant dense<0.000000e+00> : vector<8x16xf32>
    %54 = tpu.matmul %20, %53, %cst_26 {dimension_numbers = #tpu.dot_dimension_numbers<[1], [0], [0], [1], [0, 0, 1, 1], [], []>} : vector<8x24xf32>, vector<24x16xf32>, vector<8x16xf32> -> vector<8x16xf32>
    %55 = vector.broadcast %22 : vector<8x1xf32> to vector<8x16xf32>
    %56 = arith.addf %54, %55 : vector<8x16xf32>
    %cst_27 = arith.constant dense<0.000000e+00> : vector<8x16xf32>
    %57 = tpu.matmul %23, %26, %cst_27 {dimension_numbers = #tpu.dot_dimension_numbers<[1], [0], [0], [1], [0, 0, 1, 1], [], []>} : vector<8x4xf32>, vector<4x16xf32>, vector<8x16xf32> -> vector<8x16xf32>
    %58 = vector.broadcast %24 : vector<8x1xf32> to vector<8x16xf32>
    %59 = arith.addf %57, %58 : vector<8x16xf32>
    %60 = arith.addf %56, %59 : vector<8x16xf32>
    %cst_28 = arith.constant 0.000000e+00 : f32
    %61 = vector.broadcast %cst_28 : f32 to vector<8x16xf32>
    %62 = arith.maximumf %60, %61 : vector<8x16xf32>
    %c0_29 = arith.constant 0 : index
    %c0_30 = arith.constant 0 : index
    %c0_31 = arith.constant 0 : index
    %63 = vector.load %arg8[%c0_29, %c0_30, %c0_31] : memref<2x8x16xf32, #tpu.memory_space<vmem>>, vector<1x8x16xf32>
    %64 = vector.shape_cast %63 : vector<1x8x16xf32> to vector<8x16xf32>
    %65 = vector.shape_cast %62 : vector<8x16xf32> to vector<1x8x16xf32>
    tpu.vector_store %arg8[%c0_29, %c0_30, %c0_31], %65 {strides = array<i32>} : memref<2x8x16xf32, #tpu.memory_space<vmem>>, vector<1x8x16xf32>,
    %c1 = arith.constant 1 : index
    %c0_32 = arith.constant 0 : index
    %c0_33 = arith.constant 0 : index
    %66 = vector.load %arg1[%c1, %c0_32, %c0_33] : memref<2x4x16xf32, #tpu.memory_space<vmem>>, vector<1x4x16xf32>
    %67 = vector.shape_cast %66 : vector<1x4x16xf32> to vector<4x16xf32>
    %c1_i32_34 = arith.constant 1 : i32
    %68 = tpu.dynamic_rotate %67 by %c1_i32_34 dim 1 : vector<4x16xf32>, i32 -> vector<4x16xf32>
    %cst_35 = arith.constant 0.000000e+00 : f32
    %69 = vector.broadcast %cst_35 : f32 to vector<4x16xf32>
    %70 = vector.shape_cast %9 : vector<1x16xi1> to vector<1x16xi1>
    %71 = vector.broadcast %70 : vector<1x16xi1> to vector<4x16xi1>
    %72 = arith.select %71, %68, %69 : vector<4x16xi1>, vector<4x16xf32>
    %c15_i32_36 = arith.constant 15 : i32
    %73 = tpu.dynamic_rotate %67 by %c15_i32_36 dim 1 : vector<4x16xf32>, i32 -> vector<4x16xf32>
    %cst_37 = arith.constant 0.000000e+00 : f32
    %74 = vector.broadcast %cst_37 : f32 to vector<4x16xf32>
    %75 = vector.shape_cast %18 : vector<1x16xi1> to vector<1x16xi1>
    %76 = vector.broadcast %75 : vector<1x16xi1> to vector<4x16xi1>
    %77 = arith.select %76, %73, %74 : vector<4x16xi1>, vector<4x16xf32>
    %78 = tpu.concatenate %72, %67, %77 in 0 : vector<4x16xf32>, vector<4x16xf32>, vector<4x16xf32> -> vector<12x16xf32>
    %cst_38 = arith.constant dense<0.000000e+00> : vector<8x16xf32>
    %79 = tpu.matmul %19, %78, %cst_38 {dimension_numbers = #tpu.dot_dimension_numbers<[1], [0], [0], [1], [0, 0, 1, 1], [], []>} : vector<8x12xf32>, vector<12x16xf32>, vector<8x16xf32> -> vector<8x16xf32>
    %80 = vector.broadcast %21 : vector<8x1xf32> to vector<8x16xf32>
    %81 = arith.addf %79, %80 : vector<8x16xf32>
    %cst_39 = arith.constant 0.000000e+00 : f32
    %82 = vector.broadcast %cst_39 : f32 to vector<8x16xf32>
    %83 = arith.maximumf %81, %82 : vector<8x16xf32>
    %c1_i32_40 = arith.constant 1 : i32
    %84 = tpu.dynamic_rotate %83 by %c1_i32_40 dim 1 : vector<8x16xf32>, i32 -> vector<8x16xf32>
    %cst_41 = arith.constant 0.000000e+00 : f32
    %85 = vector.broadcast %cst_41 : f32 to vector<8x16xf32>
    %86 = vector.shape_cast %9 : vector<1x16xi1> to vector<1x16xi1>
    %87 = vector.broadcast %86 : vector<1x16xi1> to vector<8x16xi1>
    %88 = arith.select %87, %84, %85 : vector<8x16xi1>, vector<8x16xf32>
    %c15_i32_42 = arith.constant 15 : i32
    %89 = tpu.dynamic_rotate %83 by %c15_i32_42 dim 1 : vector<8x16xf32>, i32 -> vector<8x16xf32>
    %cst_43 = arith.constant 0.000000e+00 : f32
    %90 = vector.broadcast %cst_43 : f32 to vector<8x16xf32>
    %91 = vector.shape_cast %18 : vector<1x16xi1> to vector<1x16xi1>
    %92 = vector.broadcast %91 : vector<1x16xi1> to vector<8x16xi1>
    %93 = arith.select %92, %89, %90 : vector<8x16xi1>, vector<8x16xf32>
    %94 = tpu.concatenate %88, %83, %93 in 0 : vector<8x16xf32>, vector<8x16xf32>, vector<8x16xf32> -> vector<24x16xf32>
    %cst_44 = arith.constant dense<0.000000e+00> : vector<8x16xf32>
    %95 = tpu.matmul %20, %94, %cst_44 {dimension_numbers = #tpu.dot_dimension_numbers<[1], [0], [0], [1], [0, 0, 1, 1], [], []>} : vector<8x24xf32>, vector<24x16xf32>, vector<8x16xf32> -> vector<8x16xf32>
    %96 = vector.broadcast %22 : vector<8x1xf32> to vector<8x16xf32>
    %97 = arith.addf %95, %96 : vector<8x16xf32>
    %cst_45 = arith.constant dense<0.000000e+00> : vector<8x16xf32>
    %98 = tpu.matmul %23, %67, %cst_45 {dimension_numbers = #tpu.dot_dimension_numbers<[1], [0], [0], [1], [0, 0, 1, 1], [], []>} : vector<8x4xf32>, vector<4x16xf32>, vector<8x16xf32> -> vector<8x16xf32>
    %99 = vector.broadcast %24 : vector<8x1xf32> to vector<8x16xf32>
    %100 = arith.addf %98, %99 : vector<8x16xf32>
    %101 = arith.addf %97, %100 : vector<8x16xf32>
    %cst_46 = arith.constant 0.000000e+00 : f32
    %102 = vector.broadcast %cst_46 : f32 to vector<8x16xf32>
    %103 = arith.maximumf %101, %102 : vector<8x16xf32>
    %c1_47 = arith.constant 1 : index
    %c0_48 = arith.constant 0 : index
    %c0_49 = arith.constant 0 : index
    %104 = vector.load %arg8[%c1_47, %c0_48, %c0_49] : memref<2x8x16xf32, #tpu.memory_space<vmem>>, vector<1x8x16xf32>
    %105 = vector.shape_cast %104 : vector<1x8x16xf32> to vector<8x16xf32>
    %106 = vector.shape_cast %103 : vector<8x16xf32> to vector<1x8x16xf32>
    tpu.vector_store %arg8[%c1_47, %c0_48, %c0_49], %106 {strides = array<i32>} : memref<2x8x16xf32, #tpu.memory_space<vmem>>, vector<1x8x16xf32>,
    return
  }
  func.func @transform_0(%arg0: i32) -> (i32, i32, i32) {
    %c0_i32 = arith.constant 0 : i32
    %c0_i32_0 = arith.constant 0 : i32
    %c0_i32_1 = arith.constant 0 : i32
    return %arg0, %c0_i32, %c0_i32_0 : i32, i32, i32
  }
  func.func @transform_1(%arg0: i32) -> (i32, i32) {
    %c0_i32 = arith.constant 0 : i32
    %c0_i32_0 = arith.constant 0 : i32
    %c0_i32_1 = arith.constant 0 : i32
    return %c0_i32, %c0_i32_0 : i32, i32
  }
  func.func @transform_2(%arg0: i32) -> (i32, i32) {
    %c0_i32 = arith.constant 0 : i32
    %c0_i32_0 = arith.constant 0 : i32
    %c0_i32_1 = arith.constant 0 : i32
    return %c0_i32, %c0_i32_0 : i32, i32
  }
  func.func @transform_3(%arg0: i32) -> (i32, i32) {
    %c0_i32 = arith.constant 0 : i32
    %c0_i32_0 = arith.constant 0 : i32
    %c0_i32_1 = arith.constant 0 : i32
    return %c0_i32, %c0_i32_0 : i32, i32
  }
  func.func @transform_4(%arg0: i32) -> (i32, i32) {
    %c0_i32 = arith.constant 0 : i32
    %c0_i32_0 = arith.constant 0 : i32
    %c0_i32_1 = arith.constant 0 : i32
    return %c0_i32, %c0_i32_0 : i32, i32
  }
  func.func @transform_5(%arg0: i32) -> (i32, i32) {
    %c0_i32 = arith.constant 0 : i32
    %c0_i32_0 = arith.constant 0 : i32
    %c0_i32_1 = arith.constant 0 : i32
    return %c0_i32, %c0_i32_0 : i32, i32
  }
  func.func @transform_6(%arg0: i32) -> (i32, i32) {
    %c0_i32 = arith.constant 0 : i32
    %c0_i32_0 = arith.constant 0 : i32
    %c0_i32_1 = arith.constant 0 : i32
    return %c0_i32, %c0_i32_0 : i32, i32
  }
  func.func @transform_7(%arg0: i32) -> (i32, i32, i32) {
    %c0_i32 = arith.constant 0 : i32
    %c0_i32_0 = arith.constant 0 : i32
    %c0_i32_1 = arith.constant 0 : i32
    return %arg0, %c0_i32, %c0_i32_0 : i32, i32, i32
  }
}

</mosaic_0001>

<llo_original>
// kernel: tpu_custom_call.1
$region0: #{tpu_custom_call.1}
  #allocation0 [shape = 'u32[]', space=smem, size = 0x4, offset = 0x4, fixed_abs, tag = 'smem constant byte address 0x4 - core index']
  #allocation1 [shape = 'u32[144,128]{1,0:T(1,128)}', space=vmem, size = 0x12000, scoped, tag = 'internal scratch']
  %s0 = inlined_call_operand.vmem [shape: f32[4,4,16], index: 0, kind: input, shape index: {}]
  %s1 = inlined_call_operand.vmem [shape: f32[8,12], index: 1, kind: input, shape index: {}]
  %s2 = inlined_call_operand.vmem [shape: f32[8,1], index: 2, kind: input, shape index: {}]
  %s3 = inlined_call_operand.vmem [shape: f32[8,24], index: 3, kind: input, shape index: {}]
  %s4 = inlined_call_operand.vmem [shape: f32[8,1], index: 4, kind: input, shape index: {}]
  %s5 = inlined_call_operand.vmem [shape: f32[8,4], index: 5, kind: input, shape index: {}]
  %s6 = inlined_call_operand.vmem [shape: f32[8,1], index: 6, kind: input, shape index: {}]
  %s7 = inlined_call_operand.hbm [shape: f32[4,8,16], index: 7, kind: output, shape index: {}]
  %s8 = sld [smem:[#allocation0]]
  $region61: #{tpu_custom_call.1} parent=0
    _
  %s10 = ssub.s32 1, %s8
  %s11 = scalar_select 0, %s10, %s8
  $region1: #{tpu_custom_call.1} parent=0
    #allocation2 [shape = 'u8[16384]{0}', space=vmem, size = 0x4000, scoped, tag = 'output window, operand 0']
    #allocation3 [shape = 's32[2]{0}', space=sflag, size = 0x8, scoped, tag = 'scoped memory for tpu_custom_call.1']
    %12 = vsyncpa [#allocation3], 0
    %s13 = scalar_lea.sflag [#allocation3], 1
    %14 = vsyncpa %s13, 0
    loop: start=0, step=1, limit=4
    $region2: #{tpu_custom_call.1} parent=1 // loop_pre_header
      _
    $region3: #{tpu_custom_call.1} parent=1 // loop_header
      %s16 = sphi 0, %s20
      %p17 = scmp.ge.s32.totalorder %s16, 4
      %s26 = sphi 0, %s28
      %s29 = sphi 0, %s26
      %s30 = sphi 0, %s29
      %s46 = sphi 0, %s30
      %s50 = sphi 0, %s50
      %s52 = sphi 0, %s50
      %s53 = sphi 0, %s52
      %s67 = sphi 0, %s53
      %s71 = sphi 0, %s71
      %s73 = sphi 0, %s71
      %s74 = sphi 0, %s73
      %s88 = sphi 0, %s74
      %s92 = sphi 0, %s92
      %s94 = sphi 0, %s92
      %s95 = sphi 0, %s94
      %s109 = sphi 0, %s95
      %s113 = sphi 0, %s113
      %s115 = sphi 0, %s113
      %s116 = sphi 0, %s115
      %s130 = sphi 0, %s116
      %s134 = sphi 0, %s134
      %s136 = sphi 0, %s134
      %s137 = sphi 0, %s136
      %s151 = sphi 0, %s137
      %s155 = sphi 0, %s155
      %s157 = sphi 0, %s155
      %s158 = sphi 0, %s157
      %s172 = sphi 0, %s158
      %s178 = sphi 0, %s180
      %s181 = sphi 0, %s178
      %s182 = sphi 0, %s181
      %s198 = sphi 0, %s182
    $region4: #{tpu_custom_call.1} parent=1 // loop_header_branch
      %19 = sbr.rel (%p17) target = $region8
    $region5: #{tpu_custom_call.1} parent=1 // loop_body
      %s21 = ssub.s32 %s16, 1
      %s22 = ssub.s32 %s16, 2
      %s23 = sadd.s32 %s16, 1
      %s24 = ssub.s32 %s16, %s23
      %p25 = scmp.eq.s32.totalorder %s24, 0
      %s27 = sadd.s32 %s26, 1
      %s28 = scalar_select %p25, %s26, %s27
      %p31 = pneg %p25
      %p32 = scmp.eq.s32.totalorder %s16, 1
      %p33 = por %p31, %p32
      %p34 = scmp.ne.s32.totalorder %s26, %s29
      %p35 = scmp.eq.s32.totalorder %s16, 0
      %p36 = por %p34, %p35
      %p37 = scmp.ne.s32.totalorder %s26, %s29
      %p38 = scmp.eq.s32.totalorder %s21, 1
      %p39 = por %p37, %p38
      %p40 = scmp.ne.s32.totalorder %s29, %s30
      %p41 = scmp.eq.s32.totalorder %s21, 0
      %p42 = por %p40, %p41
      %p43 = scmp.ne.s32.totalorder %s29, %s30
      %p44 = scmp.eq.s32.totalorder %s22, 1
      %p45 = por %p43, %p44
      %p47 = scmp.ne.s32.totalorder %s30, %s46
      %p48 = scmp.eq.s32.totalorder %s22, 0
      %p49 = por %p47, %p48
      %s51 = sadd.s32 %s50, 1
      %p54 = scmp.eq.s32.totalorder %s16, 1
      %p55 = scmp.ne.s32.totalorder %s50, %s52
      %p56 = scmp.eq.s32.totalorder %s16, 0
      %p57 = por %p55, %p56
      %p58 = scmp.ne.s32.totalorder %s50, %s52
      %p59 = scmp.eq.s32.totalorder %s21, 1
      %p60 = por %p58, %p59
      %p61 = scmp.ne.s32.totalorder %s52, %s53
      %p62 = scmp.eq.s32.totalorder %s21, 0
      %p63 = por %p61, %p62
      %p64 = scmp.ne.s32.totalorder %s52, %s53
      %p65 = scmp.eq.s32.totalorder %s22, 1
      %p66 = por %p64, %p65
      %p68 = scmp.ne.s32.totalorder %s53, %s67
      %p69 = scmp.eq.s32.totalorder %s22, 0
      %p70 = por %p68, %p69
      %s72 = sadd.s32 %s71, 1
      %p75 = scmp.eq.s32.totalorder %s16, 1
      %p76 = scmp.ne.s32.totalorder %s71, %s73
      %p77 = scmp.eq.s32.totalorder %s16, 0
      %p78 = por %p76, %p77
      %p79 = scmp.ne.s32.totalorder %s71, %s73
      %p80 = scmp.eq.s32.totalorder %s21, 1
      %p81 = por %p79, %p80
      %p82 = scmp.ne.s32.totalorder %s73, %s74
      %p83 = scmp.eq.s32.totalorder %s21, 0
      %p84 = por %p82, %p83
      %p85 = scmp.ne.s32.totalorder %s73, %s74
      %p86 = scmp.eq.s32.totalorder %s22, 1
      %p87 = por %p85, %p86
      %p89 = scmp.ne.s32.totalorder %s74, %s88
      %p90 = scmp.eq.s32.totalorder %s22, 0
      %p91 = por %p89, %p90
      %s93 = sadd.s32 %s92, 1
      %p96 = scmp.eq.s32.totalorder %s16, 1
      %p97 = scmp.ne.s32.totalorder %s92, %s94
      %p98 = scmp.eq.s32.totalorder %s16, 0
      %p99 = por %p97, %p98
      %p100 = scmp.ne.s32.totalorder %s92, %s94
      %p101 = scmp.eq.s32.totalorder %s21, 1
      %p102 = por %p100, %p101
      %p103 = scmp.ne.s32.totalorder %s94, %s95
      %p104 = scmp.eq.s32.totalorder %s21, 0
      %p105 = por %p103, %p104
      %p106 = scmp.ne.s32.totalorder %s94, %s95
      %p107 = scmp.eq.s32.totalorder %s22, 1
      %p108 = por %p106, %p107
      %p110 = scmp.ne.s32.totalorder %s95, %s109
      %p111 = scmp.eq.s32.totalorder %s22, 0
      %p112 = por %p110, %p111
      %s114 = sadd.s32 %s113, 1
      %p117 = scmp.eq.s32.totalorder %s16, 1
      %p118 = scmp.ne.s32.totalorder %s113, %s115
      %p119 = scmp.eq.s32.totalorder %s16, 0
      %p120 = por %p118, %p119
      %p121 = scmp.ne.s32.totalorder %s113, %s115
      %p122 = scmp.eq.s32.totalorder %s21, 1
      %p123 = por %p121, %p122
      %p124 = scmp.ne.s32.totalorder %s115, %s116
      %p125 = scmp.eq.s32.totalorder %s21, 0
      %p126 = por %p124, %p125
      %p127 = scmp.ne.s32.totalorder %s115, %s116
      %p128 = scmp.eq.s32.totalorder %s22, 1
      %p129 = por %p127, %p128
      %p131 = scmp.ne.s32.totalorder %s116, %s130
      %p132 = scmp.eq.s32.totalorder %s22, 0
      %p133 = por %p131, %p132
      %s135 = sadd.s32 %s134, 1
      %p138 = scmp.eq.s32.totalorder %s16, 1
      %p139 = scmp.ne.s32.totalorder %s134, %s136
      %p140 = scmp.eq.s32.totalorder %s16, 0
      %p141 = por %p139, %p140
      %p142 = scmp.ne.s32.totalorder %s134, %s136
      %p143 = scmp.eq.s32.totalorder %s21, 1
      %p144 = por %p142, %p143
      %p145 = scmp.ne.s32.totalorder %s136, %s137
      %p146 = scmp.eq.s32.totalorder %s21, 0
      %p147 = por %p145, %p146
      %p148 = scmp.ne.s32.totalorder %s136, %s137
      %p149 = scmp.eq.s32.totalorder %s22, 1
      %p150 = por %p148, %p149
      %p152 = scmp.ne.s32.totalorder %s137, %s151
      %p153 = scmp.eq.s32.totalorder %s22, 0
      %p154 = por %p152, %p153
      %s156 = sadd.s32 %s155, 1
      %p159 = scmp.eq.s32.totalorder %s16, 1
      %p160 = scmp.ne.s32.totalorder %s155, %s157
      %p161 = scmp.eq.s32.totalorder %s16, 0
      %p162 = por %p160, %p161
      %p163 = scmp.ne.s32.totalorder %s155, %s157
      %p164 = scmp.eq.s32.totalorder %s21, 1
      %p165 = por %p163, %p164
      %p166 = scmp.ne.s32.totalorder %s157, %s158
      %p167 = scmp.eq.s32.totalorder %s21, 0
      %p168 = por %p166, %p167
      %p169 = scmp.ne.s32.totalorder %s157, %s158
      %p170 = scmp.eq.s32.totalorder %s22, 1
      %p171 = por %p169, %p170
      %p173 = scmp.ne.s32.totalorder %s158, %s172
      %p174 = scmp.eq.s32.totalorder %s22, 0
      %p175 = por %p173, %p174
      %s176 = ssub.s32 %s16, %s23
      %p177 = scmp.eq.s32.totalorder %s176, 0
      %s179 = sadd.s32 %s178, 1
      %s180 = scalar_select %p177, %s178, %s179
      %p183 = pneg %p177
      %p184 = scmp.eq.s32.totalorder %s16, 1
      %p185 = por %p183, %p184
      %p186 = scmp.ne.s32.totalorder %s178, %s181
      %p187 = scmp.eq.s32.totalorder %s16, 0
      %p188 = por %p186, %p187
      %p189 = scmp.ne.s32.totalorder %s178, %s181
      %p190 = scmp.eq.s32.totalorder %s21, 1
      %p191 = por %p189, %p190
      %p192 = scmp.ne.s32.totalorder %s181, %s182
      %p193 = scmp.eq.s32.totalorder %s21, 0
      %p194 = por %p192, %p193
      %p195 = scmp.ne.s32.totalorder %s181, %s182
      %p196 = scmp.eq.s32.totalorder %s22, 1
      %p197 = por %p195, %p196
      %p199 = scmp.ne.s32.totalorder %s182, %s198
      %p200 = scmp.eq.s32.totalorder %s22, 0
      %p201 = por %p199, %p200
      %p202 = scmp.le.s32.totalorder 1, %s16
      %p203 = scmp.lt.s32.totalorder %s16, 3
      %p204 = pnand %p202, %p203
      %p205 = pneg %p204
      // Predicated region
      $region9: #{tpu_custom_call.1} parent=5 // pred_check
        _
      $region10: #{tpu_custom_call.1} parent=5 // pred_check_branch
        %207 = sbr.rel (%p204) target = $region12
      $region11: #{tpu_custom_call.1} parent=5 // pred_region
        %s208 = ssub.s32 %s16, 1
        // Predicated region
        $region13: #{tpu_custom_call.1} parent=11 // pred_check
          %p209 = pneg %p63
        $region14: #{tpu_custom_call.1} parent=11 // pred_check_branch
          %211 = sbr.rel (%p209) target = $region16
        $region15: #{tpu_custom_call.1} parent=11 // pred_region
          _
        $region16: #{tpu_custom_call.1} parent=11 // pred_fallthru
          _
        // Predicated region
        $region17: #{tpu_custom_call.1} parent=11 // pred_check
          %p212 = pneg %p84
        $region18: #{tpu_custom_call.1} parent=11 // pred_check_branch
          %214 = sbr.rel (%p212) target = $region20
        $region19: #{tpu_custom_call.1} parent=11 // pred_region
          _
        $region20: #{tpu_custom_call.1} parent=11 // pred_fallthru
          _
        // Predicated region
        $region21: #{tpu_custom_call.1} parent=11 // pred_check
          %p215 = pneg %p105
        $region22: #{tpu_custom_call.1} parent=11 // pred_check_branch
          %217 = sbr.rel (%p215) target = $region24
        $region23: #{tpu_custom_call.1} parent=11 // pred_region
          _
        $region24: #{tpu_custom_call.1} parent=11 // pred_fallthru
          _
        // Predicated region
        $region25: #{tpu_custom_call.1} parent=11 // pred_check
          %p218 = pneg %p126
        $region26: #{tpu_custom_call.1} parent=11 // pred_check_branch
          %220 = sbr.rel (%p218) target = $region28
        $region27: #{tpu_custom_call.1} parent=11 // pred_region
          _
        $region28: #{tpu_custom_call.1} parent=11 // pred_fallthru
          _
        // Predicated region
        $region29: #{tpu_custom_call.1} parent=11 // pred_check
          %p221 = pneg %p147
        $region30: #{tpu_custom_call.1} parent=11 // pred_check_branch
          %223 = sbr.rel (%p221) target = $region32
        $region31: #{tpu_custom_call.1} parent=11 // pred_region
          _
        $region32: #{tpu_custom_call.1} parent=11 // pred_fallthru
          _
        // Predicated region
        $region33: #{tpu_custom_call.1} parent=11 // pred_check
          %p224 = pneg %p168
        $region34: #{tpu_custom_call.1} parent=11 // pred_check_branch
          %226 = sbr.rel (%p224) target = $region36
        $region35: #{tpu_custom_call.1} parent=11 // pred_region
          _
        $region36: #{tpu_custom_call.1} parent=11 // pred_fallthru
          _
      $region12: #{tpu_custom_call.1} parent=5 // pred_fallthru
        _
      %p227 = scmp.lt.s32.totalorder %s16, 2
      // Predicated region
      $region37: #{tpu_custom_call.1} parent=5 // pred_check
        %p228 = pneg %p227
      $region38: #{tpu_custom_call.1} parent=5 // pred_check_branch
        %230 = sbr.rel (%p228) target = $region40
      $region39: #{tpu_custom_call.1} parent=5 // pred_region
        // Predicated region
        $region41: #{tpu_custom_call.1} parent=39 // pred_check
          %p231 = pneg %p36
        $region42: #{tpu_custom_call.1} parent=39 // pred_check_branch
          %233 = sbr.rel (%p231) target = $region44
        $region43: #{tpu_custom_call.1} parent=39 // pred_region
          %s234 = smul.u32 2, %s16
          %p235 = scmp.lt.s32.totalorder %s234, 3
          %s236 = scalar_select %p235, %s234, 3
          %s237 = smul.addr %s236, 4
          %s238 = scalar_lea.vmem %s0, %s237
          %s239 = smul.u32 2, %s16
        $region44: #{tpu_custom_call.1} parent=39 // pred_fallthru
          _
      $region40: #{tpu_custom_call.1} parent=5 // pred_fallthru
        _
      %p240 = scmp.le.s32.totalorder 1, %s16
      %p241 = scmp.lt.s32.totalorder %s16, 3
      %p242 = pnand %p240, %p241
      %p243 = pneg %p242
      // Predicated region
      $region45: #{tpu_custom_call.1} parent=5 // pred_check
        _
      $region46: #{tpu_custom_call.1} parent=5 // pred_check_branch
        %245 = sbr.rel (%p242) target = $region48
      $region47: #{tpu_custom_call.1} parent=5 // pred_region
        %s246 = ssub.s32 %s16, 1
        %s247 = smul.u32 2, %s21
        %p248 = scmp.lt.s32.totalorder %s247, 3
        %s249 = scalar_select %p248, %s247, 3
        %s250 = smul.addr %s249, 4
        %s251 = scalar_lea.vmem %s0, %s250
        %p252 = pneg %p42
        %p253 = pneg %p39
        %p254 = pneg %p63
        %p255 = pneg %p60
        %p256 = pneg %p84
        %p257 = pneg %p81
        %p258 = pneg %p105
        %p259 = pneg %p102
        %p260 = pneg %p126
        %p261 = pneg %p123
        %p262 = pneg %p147
        %p263 = pneg %p144
        %p264 = pneg %p168
        %p265 = pneg %p165
        %p266 = pneg %p194
        %p267 = pneg %p191
        %s268 = sand.u32 %s181, 1
        %s269 = scalar_lea.sflag [#allocation3], %s268
        %s270 = sand.u32 %s181, 1
        %s271 = smul.addr %s270, 16
        %s272 = scalar_lea.vmem [#allocation2], %s271
        %s273 = smul.u32 2, %s21
        %p274 = scmp.lt.s32.totalorder %s273, 3
        %s275 = scalar_select %p274, %s273, 3
        %s276 = smul.addr %s275, 4
        %s277 = scalar_lea.vmem %s0, %s276
        %s278 = smul.u32 2, %s21
        %s279 = smul.u32 2, %s21
        %v280 = vlaneseq
        %v281 = vand.u32 %v280, 127
        %v282 = vadd.s32 %v281, 4294967295
        %vm283 = vcmp.ge.s32.totalorder %v282, 0
        %vm284 = vcmp.lt.s32.totalorder %v282, 16
        %vm285 = vmand %vm283, %vm284
        %v286 = vadd.s32 %v281, 1
        %vm287 = vcmp.ge.s32.totalorder %v286, 0
        %vm288 = vcmp.lt.s32.totalorder %v286, 16
        %vm289 = vmand %vm287, %vm288
        %v290 = vld [vmem:[%s1] sm:$0xff]
        %v291 = vld [vmem:[%s3] sm:$0xff]
        %v292 = vld [vmem:[%s2] sm:$0xff]
        %v293 = vld [vmem:[%s4] sm:$0xff]
        %v294 = vld [vmem:[%s5] sm:$0xff]
        %v295 = vld [vmem:[%s6] sm:$0xff]
        %v296 = vld [vmem:[%s277] sm:$0xf]
        %vm297 = vcmask 1047680
        %298 = vrot.lane.b32.xlu0 %v296, 16
        %v299 = vpop.permute.xlu0 %298
        %v300 = vsel %vm297, %v299, %v296
        %301 = vrot.lane.b32.xlu0 %v300, 16
        %v302 = vpop.permute.xlu0 %301
        %v303 = vsel %vm297, %v302, %v296
        %v304 = vsel %vm285, 1, 0
        %vm305 = vcmp.eq.s32.totalorder %v304, 1
        %307 = vrot.lane.b32.xlu0 %v303, 113
        %v308 = vpop.permute.xlu0 %307
        %v310 = vsel %vm305, %v308, 0.0
        %v311 = vsel %vm289, 1, 0
        %vm312 = vcmp.eq.s32.totalorder %v311, 1
        %313 = vrot.lane.b32.xlu0 %v303, 127
        %v314 = vpop.permute.xlu0 %313
        %v316 = vsel %vm312, %v314, 0.0
        %v318 = vrot.slane %v296, 4
        %vm320 = vcmask 1043456
        %v321 = vsel %vm320, %v310, %v318
        %323 = vset.pattern.permute.xlu0 0
        %324 = vperm.xlu0 %323, %v292
        %v325 = vpop.permute.xlu0 %324
        %vm327 = vcmask 97280
        %v329 = vsel %vm327, %v290, 0
        %v332 = vsel %vm320, %v316, 0
        %334 = vmatprep.subr.mxu0 0.0
        %335 = vmatpush1.msra.mxu0 %v321
        %336 = vmatprep.subr.mxu0 0.0
        %337 = vmatpush1.msra.mxu0 %v332
        %338 = vmatprep.subr.mxu0 0.0
        %339 = vmatpush1.msra.mxu0 0.0
        %340 = vmatprep.subr.mxu0 0.0
        %341 = vmatpush1.msra.mxu0 0.0
        %342 = vmatprep.subr.mxu0 0.0
        %343 = vmatpush1.msra.mxu0 0.0
        %344 = vmatprep.subr.mxu0 0.0
        %345 = vmatpush1.msra.mxu0 0.0
        %346 = vmatprep.subr.mxu0 0.0
        %347 = vmatpush1.msra.mxu0 0.0
        %348 = vmatprep.subr.mxu0 0.0
        %349 = vmatpush1.msra.mxu0 0.0
        %350 = vmatprep.subr.mxu0 0.0
        %351 = vmatpush1.msra.mxu0 0.0
        %352 = vmatprep.subr.mxu0 0.0
        %353 = vmatpush1.msra.mxu0 0.0
        %354 = vmatprep.subr.mxu0 0.0
        %355 = vmatpush1.msra.mxu0 0.0
        %356 = vmatprep.subr.mxu0 0.0
        %357 = vmatpush1.msra.mxu0 0.0
        %358 = vmatprep.subr.mxu0 0.0
        %359 = vmatpush1.msra.mxu0 0.0
        %360 = vmatprep.subr.mxu0 0.0
        %361 = vmatpush1.msra.mxu0 0.0
        %362 = vmatprep.subr.mxu0 0.0
        %363 = vmatpush1.msra.mxu0 0.0
        %364 = vmatprep.subr.mxu0 0.0
        %365 = vmatpush1.msra.mxu0 0.0
        %366 = vmatprep.subr.mxu0 0.0
        %367 = vmatpush1.msra.mxu0 0.0
        %368 = vmatprep.subr.mxu0 0.0
        %369 = vmatpush1.msra.mxu0 0.0
        %370 = vmatprep.subr.mxu0 0.0
        %371 = vmatpush1.msra.mxu0 0.0
        %372 = vmatprep.subr.mxu0 0.0
        %373 = vmatpush1.msra.mxu0 0.0
        %374 = vmatprep.subr.mxu0 0.0
        %375 = vmatpush1.msra.mxu0 0.0
        %376 = vmatprep.subr.mxu0 0.0
        %377 = vmatpush1.msra.mxu0 0.0
        %378 = vmatprep.subr.mxu0 0.0
        %379 = vmatpush1.msra.mxu0 0.0
        %380 = vmatprep.subr.mxu0 0.0
        %381 = vmatpush1.msra.mxu0 0.0
        %382 = vmatprep.subr.mxu0 0.0
        %383 = vmatpush1.msra.mxu0 0.0
        %384 = vmatprep.subr.mxu0 0.0
        %385 = vmatpush1.msra.mxu0 0.0
        %386 = vmatprep.subr.mxu0 0.0
        %387 = vmatpush1.msra.mxu0 0.0
        %388 = vmatprep.subr.mxu0 0.0
        %389 = vmatpush1.msra.mxu0 0.0
        %390 = vmatprep.subr.mxu0 0.0
        %391 = vmatpush1.msra.mxu0 0.0
        %392 = vmatprep.subr.mxu0 0.0
        %393 = vmatpush1.msra.mxu0 0.0
        %394 = vmatprep.subr.mxu0 0.0
        %395 = vmatpush1.msra.mxu0 0.0
        %396 = vmatprep.subr.mxu0 0.0
        %397 = vmatpush1.msra.mxu0 0.0
        %398 = vmatprep.mubr.f32.mxu0 0.0
        %399 = vmatmul.mubr.f32.gmra.mrb[0].mxu0 %v329
        %v400 = vpop.f32.mrb[0].mxu0
        %v401 = vadd.f32 %v325, %v400
        %v402 = vpop.f32.mrb[0].mxu0
        %403 = vdwg.mxu0
        %v404 = vmax.f32 %v401, 0.0
        %405 = vrot.lane.b32.xlu0 %v404, 16
        %v406 = vpop.permute.xlu0 %405
        %v407 = vsel %vm297, %v406, %v404
        %408 = vrot.lane.b32.xlu0 %v407, 16
        %v409 = vpop.permute.xlu0 %408
        %v410 = vsel %vm297, %v409, %v404
        %412 = vrot.lane.b32.xlu0 %v410, 113
        %v413 = vpop.permute.xlu0 %412
        %v415 = vsel %vm305, %v413, 0.0
        %416 = vrot.lane.b32.xlu0 %v410, 127
        %v417 = vpop.permute.xlu0 %416
        %v419 = vsel %vm312, %v417, 0.0
        %421 = vset.pattern.permute.xlu0 0
        %422 = vperm.xlu0 %421, %v293
        %v423 = vpop.permute.xlu0 %422
        %vm425 = vcmask 195584
        %v427 = vsel %vm425, %v291, 0
        %429 = vmatprep.subr.mxu0 0.0
        %430 = vmatpush1.msra.mxu0 %v415
        %431 = vmatprep.subr.mxu0 0.0
        %432 = vmatpush1.msra.mxu0 %v404
        %433 = vmatprep.subr.mxu0 0.0
        %434 = vmatpush1.msra.mxu0 %v419
        %435 = vmatprep.subr.mxu0 0.0
        %436 = vmatpush1.msra.mxu0 0.0
        %437 = vmatprep.subr.mxu0 0.0
        %438 = vmatpush1.msra.mxu0 0.0
        %439 = vmatprep.subr.mxu0 0.0
        %440 = vmatpush1.msra.mxu0 0.0
        %441 = vmatprep.subr.mxu0 0.0
        %442 = vmatpush1.msra.mxu0 0.0
        %443 = vmatprep.subr.mxu0 0.0
        %444 = vmatpush1.msra.mxu0 0.0
        %445 = vmatprep.subr.mxu0 0.0
        %446 = vmatpush1.msra.mxu0 0.0
        %447 = vmatprep.subr.mxu0 0.0
        %448 = vmatpush1.msra.mxu0 0.0
        %449 = vmatprep.subr.mxu0 0.0
        %450 = vmatpush1.msra.mxu0 0.0
        %451 = vmatprep.subr.mxu0 0.0
        %452 = vmatpush1.msra.mxu0 0.0
        %453 = vmatprep.subr.mxu0 0.0
        %454 = vmatpush1.msra.mxu0 0.0
        %455 = vmatprep.subr.mxu0 0.0
        %456 = vmatpush1.msra.mxu0 0.0
        %457 = vmatprep.subr.mxu0 0.0
        %458 = vmatpush1.msra.mxu0 0.0
        %459 = vmatprep.subr.mxu0 0.0
        %460 = vmatpush1.msra.mxu0 0.0
        %461 = vmatprep.subr.mxu0 0.0
        %462 = vmatpush1.msra.mxu0 0.0
        %463 = vmatprep.subr.mxu0 0.0
        %464 = vmatpush1.msra.mxu0 0.0
        %465 = vmatprep.subr.mxu0 0.0
        %466 = vmatpush1.msra.mxu0 0.0
        %467 = vmatprep.subr.mxu0 0.0
        %468 = vmatpush1.msra.mxu0 0.0
        %469 = vmatprep.subr.mxu0 0.0
        %470 = vmatpush1.msra.mxu0 0.0
        %471 = vmatprep.subr.mxu0 0.0
        %472 = vmatpush1.msra.mxu0 0.0
        %473 = vmatprep.subr.mxu0 0.0
        %474 = vmatpush1.msra.mxu0 0.0
        %475 = vmatprep.subr.mxu0 0.0
        %476 = vmatpush1.msra.mxu0 0.0
        %477 = vmatprep.subr.mxu0 0.0
        %478 = vmatpush1.msra.mxu0 0.0
        %479 = vmatprep.subr.mxu0 0.0
        %480 = vmatpush1.msra.mxu0 0.0
        %481 = vmatprep.subr.mxu0 0.0
        %482 = vmatpush1.msra.mxu0 0.0
        %483 = vmatprep.subr.mxu0 0.0
        %484 = vmatpush1.msra.mxu0 0.0
        %485 = vmatprep.subr.mxu0 0.0
        %486 = vmatpush1.msra.mxu0 0.0
        %487 = vmatprep.subr.mxu0 0.0
        %488 = vmatpush1.msra.mxu0 0.0
        %489 = vmatprep.subr.mxu0 0.0
        %490 = vmatpush1.msra.mxu0 0.0
        %491 = vmatprep.subr.mxu0 0.0
        %492 = vmatpush1.msra.mxu0 0.0
        %493 = vmatprep.mubr.f32.mxu0 0.0
        %494 = vmatmul.mubr.f32.gmra.mrb[0].mxu0 %v427
        %v495 = vpop.f32.mrb[0].mxu0
        %v496 = vadd.f32 %v423, %v495
        %v497 = vpop.f32.mrb[0].mxu0
        %498 = vdwg.mxu0
        %500 = vset.pattern.permute.xlu0 0
        %501 = vperm.xlu0 %500, %v295
        %v502 = vpop.permute.xlu0 %501
        %vm504 = vcmask 31744
        %v506 = vsel %vm504, %v294, 0
        %v508 = vsel %vm320, %v296, 0
        %510 = vmatprep.subr.mxu0 0.0
        %511 = vmatpush1.msra.mxu0 %v508
        %512 = vmatprep.subr.mxu0 0.0
        %513 = vmatpush1.msra.mxu0 0.0
        %514 = vmatprep.subr.mxu0 0.0
        %515 = vmatpush1.msra.mxu0 0.0
        %516 = vmatprep.subr.mxu0 0.0
        %517 = vmatpush1.msra.mxu0 0.0
        %518 = vmatprep.subr.mxu0 0.0
        %519 = vmatpush1.msra.mxu0 0.0
        %520 = vmatprep.subr.mxu0 0.0
        %521 = vmatpush1.msra.mxu0 0.0
        %522 = vmatprep.subr.mxu0 0.0
        %523 = vmatpush1.msra.mxu0 0.0
        %524 = vmatprep.subr.mxu0 0.0
        %525 = vmatpush1.msra.mxu0 0.0
        %526 = vmatprep.subr.mxu0 0.0
        %527 = vmatpush1.msra.mxu0 0.0
        %528 = vmatprep.subr.mxu0 0.0
        %529 = vmatpush1.msra.mxu0 0.0
        %530 = vmatprep.subr.mxu0 0.0
        %531 = vmatpush1.msra.mxu0 0.0
        %532 = vmatprep.subr.mxu0 0.0
        %533 = vmatpush1.msra.mxu0 0.0
        %534 = vmatprep.subr.mxu0 0.0
        %535 = vmatpush1.msra.mxu0 0.0
        %536 = vmatprep.subr.mxu0 0.0
        %537 = vmatpush1.msra.mxu0 0.0
        %538 = vmatprep.subr.mxu0 0.0
        %539 = vmatpush1.msra.mxu0 0.0
        %540 = vmatprep.subr.mxu0 0.0
        %541 = vmatpush1.msra.mxu0 0.0
        %542 = vmatprep.subr.mxu0 0.0
        %543 = vmatpush1.msra.mxu0 0.0
        %544 = vmatprep.subr.mxu0 0.0
        %545 = vmatpush1.msra.mxu0 0.0
        %546 = vmatprep.subr.mxu0 0.0
        %547 = vmatpush1.msra.mxu0 0.0
        %548 = vmatprep.subr.mxu0 0.0
        %549 = vmatpush1.msra.mxu0 0.0
        %550 = vmatprep.subr.mxu0 0.0
        %551 = vmatpush1.msra.mxu0 0.0
        %552 = vmatprep.subr.mxu0 0.0
        %553 = vmatpush1.msra.mxu0 0.0
        %554 = vmatprep.subr.mxu0 0.0
        %555 = vmatpush1.msra.mxu0 0.0
        %556 = vmatprep.subr.mxu0 0.0
        %557 = vmatpush1.msra.mxu0 0.0
        %558 = vmatprep.subr.mxu0 0.0
        %559 = vmatpush1.msra.mxu0 0.0
        %560 = vmatprep.subr.mxu0 0.0
        %561 = vmatpush1.msra.mxu0 0.0
        %562 = vmatprep.subr.mxu0 0.0
        %563 = vmatpush1.msra.mxu0 0.0
        %564 = vmatprep.subr.mxu0 0.0
        %565 = vmatpush1.msra.mxu0 0.0
        %566 = vmatprep.subr.mxu0 0.0
        %567 = vmatpush1.msra.mxu0 0.0
        %568 = vmatprep.subr.mxu0 0.0
        %569 = vmatpush1.msra.mxu0 0.0
        %570 = vmatprep.subr.mxu0 0.0
        %571 = vmatpush1.msra.mxu0 0.0
        %572 = vmatprep.subr.mxu0 0.0
        %573 = vmatpush1.msra.mxu0 0.0
        %574 = vmatprep.mubr.f32.mxu0 0.0
        %575 = vmatmul.mubr.f32.gmra.mrb[0].mxu0 %v506
        %v576 = vpop.f32.mrb[0].mxu0
        %v577 = vadd.f32 %v502, %v576
        %v578 = vpop.f32.mrb[0].mxu0
        %579 = vdwg.mxu0
        %v580 = vadd.f32 %v496, %v577
        %v581 = vmax.f32 %v580, 0.0
        %vm582 = vcmask 130048
        %583 = vst.msk [vmem:[%s272] sm:$0xff] %vm582, %v581
        %s584 = scalar_lea.vmem %s277, 4
        %v585 = vld [vmem:[%s584] sm:$0xf]
        %586 = vrot.lane.b32.xlu0 %v585, 16
        %v587 = vpop.permute.xlu0 %586
        %v588 = vsel %vm297, %v587, %v585
        %589 = vrot.lane.b32.xlu0 %v588, 16
        %v590 = vpop.permute.xlu0 %589
        %v591 = vsel %vm297, %v590, %v585
        %593 = vrot.lane.b32.xlu0 %v591, 113
        %v594 = vpop.permute.xlu0 %593
        %v596 = vsel %vm305, %v594, 0.0
        %597 = vrot.lane.b32.xlu0 %v591, 127
        %v598 = vpop.permute.xlu0 %597
        %v600 = vsel %vm312, %v598, 0.0
        %v602 = vrot.slane %v585, 4
        %v604 = vsel %vm320, %v596, %v602
        %v606 = vsel %vm320, %v600, 0
        %608 = vmatprep.subr.mxu0 0.0
        %609 = vmatpush1.msra.mxu0 %v604
        %610 = vmatprep.subr.mxu0 0.0
        %611 = vmatpush1.msra.mxu0 %v606
        %612 = vmatprep.subr.mxu0 0.0
        %613 = vmatpush1.msra.mxu0 0.0
        %614 = vmatprep.subr.mxu0 0.0
        %615 = vmatpush1.msra.mxu0 0.0
        %616 = vmatprep.subr.mxu0 0.0
        %617 = vmatpush1.msra.mxu0 0.0
        %618 = vmatprep.subr.mxu0 0.0
        %619 = vmatpush1.msra.mxu0 0.0
        %620 = vmatprep.subr.mxu0 0.0
        %621 = vmatpush1.msra.mxu0 0.0
        %622 = vmatprep.subr.mxu0 0.0
        %623 = vmatpush1.msra.mxu0 0.0
        %624 = vmatprep.subr.mxu0 0.0
        %625 = vmatpush1.msra.mxu0 0.0
        %626 = vmatprep.subr.mxu0 0.0
        %627 = vmatpush1.msra.mxu0 0.0
        %628 = vmatprep.subr.mxu0 0.0
        %629 = vmatpush1.msra.mxu0 0.0
        %630 = vmatprep.subr.mxu0 0.0
        %631 = vmatpush1.msra.mxu0 0.0
        %632 = vmatprep.subr.mxu0 0.0
        %633 = vmatpush1.msra.mxu0 0.0
        %634 = vmatprep.subr.mxu0 0.0
        %635 = vmatpush1.msra.mxu0 0.0
        %636 = vmatprep.subr.mxu0 0.0
        %637 = vmatpush1.msra.mxu0 0.0
        %638 = vmatprep.subr.mxu0 0.0
        %639 = vmatpush1.msra.mxu0 0.0
        %640 = vmatprep.subr.mxu0 0.0
        %641 = vmatpush1.msra.mxu0 0.0
        %642 = vmatprep.subr.mxu0 0.0
        %643 = vmatpush1.msra.mxu0 0.0
        %644 = vmatprep.subr.mxu0 0.0
        %645 = vmatpush1.msra.mxu0 0.0
        %646 = vmatprep.subr.mxu0 0.0
        %647 = vmatpush1.msra.mxu0 0.0
        %648 = vmatprep.subr.mxu0 0.0
        %649 = vmatpush1.msra.mxu0 0.0
        %650 = vmatprep.subr.mxu0 0.0
        %651 = vmatpush1.msra.mxu0 0.0
        %652 = vmatprep.subr.mxu0 0.0
        %653 = vmatpush1.msra.mxu0 0.0
        %654 = vmatprep.subr.mxu0 0.0
        %655 = vmatpush1.msra.mxu0 0.0
        %656 = vmatprep.subr.mxu0 0.0
        %657 = vmatpush1.msra.mxu0 0.0
        %658 = vmatprep.subr.mxu0 0.0
        %659 = vmatpush1.msra.mxu0 0.0
        %660 = vmatprep.subr.mxu0 0.0
        %661 = vmatpush1.msra.mxu0 0.0
        %662 = vmatprep.subr.mxu0 0.0
        %663 = vmatpush1.msra.mxu0 0.0
        %664 = vmatprep.subr.mxu0 0.0
        %665 = vmatpush1.msra.mxu0 0.0
        %666 = vmatprep.subr.mxu0 0.0
        %667 = vmatpush1.msra.mxu0 0.0
        %668 = vmatprep.subr.mxu0 0.0
        %669 = vmatpush1.msra.mxu0 0.0
        %670 = vmatprep.subr.mxu0 0.0
        %671 = vmatpush1.msra.mxu0 0.0
        %672 = vmatprep.mubr.f32.mxu0 0.0
        %673 = vmatmul.mubr.f32.gmra.mrb[0].mxu0 %v329
        %v674 = vpop.f32.mrb[0].mxu0
        %v675 = vadd.f32 %v325, %v674
        %v676 = vpop.f32.mrb[0].mxu0
        %677 = vdwg.mxu0
        %v678 = vmax.f32 %v675, 0.0
        %679 = vrot.lane.b32.xlu0 %v678, 16
        %v680 = vpop.permute.xlu0 %679
        %v681 = vsel %vm297, %v680, %v678
        %682 = vrot.lane.b32.xlu0 %v681, 16
        %v683 = vpop.permute.xlu0 %682
        %v684 = vsel %vm297, %v683, %v678
        %686 = vrot.lane.b32.xlu0 %v684, 113
        %v687 = vpop.permute.xlu0 %686
        %v689 = vsel %vm305, %v687, 0.0
        %690 = vrot.lane.b32.xlu0 %v684, 127
        %v691 = vpop.permute.xlu0 %690
        %v693 = vsel %vm312, %v691, 0.0
        %694 = vmatprep.subr.mxu0 0.0
        %695 = vmatpush1.msra.mxu0 %v689
        %696 = vmatprep.subr.mxu0 0.0
        %697 = vmatpush1.msra.mxu0 %v678
        %698 = vmatprep.subr.mxu0 0.0
        %699 = vmatpush1.msra.mxu0 %v693
        %700 = vmatprep.subr.mxu0 0.0
        %701 = vmatpush1.msra.mxu0 0.0
        %702 = vmatprep.subr.mxu0 0.0
        %703 = vmatpush1.msra.mxu0 0.0
        %704 = vmatprep.subr.mxu0 0.0
        %705 = vmatpush1.msra.mxu0 0.0
        %706 = vmatprep.subr.mxu0 0.0
        %707 = vmatpush1.msra.mxu0 0.0
        %708 = vmatprep.subr.mxu0 0.0
        %709 = vmatpush1.msra.mxu0 0.0
        %710 = vmatprep.subr.mxu0 0.0
        %711 = vmatpush1.msra.mxu0 0.0
        %712 = vmatprep.subr.mxu0 0.0
        %713 = vmatpush1.msra.mxu0 0.0
        %714 = vmatprep.subr.mxu0 0.0
        %715 = vmatpush1.msra.mxu0 0.0
        %716 = vmatprep.subr.mxu0 0.0
        %717 = vmatpush1.msra.mxu0 0.0
        %718 = vmatprep.subr.mxu0 0.0
        %719 = vmatpush1.msra.mxu0 0.0
        %720 = vmatprep.subr.mxu0 0.0
        %721 = vmatpush1.msra.mxu0 0.0
        %722 = vmatprep.subr.mxu0 0.0
        %723 = vmatpush1.msra.mxu0 0.0
        %724 = vmatprep.subr.mxu0 0.0
        %725 = vmatpush1.msra.mxu0 0.0
        %726 = vmatprep.subr.mxu0 0.0
        %727 = vmatpush1.msra.mxu0 0.0
        %728 = vmatprep.subr.mxu0 0.0
        %729 = vmatpush1.msra.mxu0 0.0
        %730 = vmatprep.subr.mxu0 0.0
        %731 = vmatpush1.msra.mxu0 0.0
        %732 = vmatprep.subr.mxu0 0.0
        %733 = vmatpush1.msra.mxu0 0.0
        %734 = vmatprep.subr.mxu0 0.0
        %735 = vmatpush1.msra.mxu0 0.0
        %736 = vmatprep.subr.mxu0 0.0
        %737 = vmatpush1.msra.mxu0 0.0
        %738 = vmatprep.subr.mxu0 0.0
        %739 = vmatpush1.msra.mxu0 0.0
        %740 = vmatprep.subr.mxu0 0.0
        %741 = vmatpush1.msra.mxu0 0.0
        %742 = vmatprep.subr.mxu0 0.0
        %743 = vmatpush1.msra.mxu0 0.0
        %744 = vmatprep.subr.mxu0 0.0
        %745 = vmatpush1.msra.mxu0 0.0
        %746 = vmatprep.subr.mxu0 0.0
        %747 = vmatpush1.msra.mxu0 0.0
        %748 = vmatprep.subr.mxu0 0.0
        %749 = vmatpush1.msra.mxu0 0.0
        %750 = vmatprep.subr.mxu0 0.0
        %751 = vmatpush1.msra.mxu0 0.0
        %752 = vmatprep.subr.mxu0 0.0
        %753 = vmatpush1.msra.mxu0 0.0
        %754 = vmatprep.subr.mxu0 0.0
        %755 = vmatpush1.msra.mxu0 0.0
        %756 = vmatprep.subr.mxu0 0.0
        %757 = vmatpush1.msra.mxu0 0.0
        %758 = vmatprep.mubr.f32.mxu0 0.0
        %759 = vmatmul.mubr.f32.gmra.mrb[0].mxu0 %v427
        %v760 = vpop.f32.mrb[0].mxu0
        %v761 = vadd.f32 %v423, %v760
        %v762 = vpop.f32.mrb[0].mxu0
        %763 = vdwg.mxu0
        %v764 = vsel %vm320, %v585, 0
        %766 = vmatprep.subr.mxu0 0.0
        %767 = vmatpush1.msra.mxu0 %v764
        %768 = vmatprep.subr.mxu0 0.0
        %769 = vmatpush1.msra.mxu0 0.0
        %770 = vmatprep.subr.mxu0 0.0
        %771 = vmatpush1.msra.mxu0 0.0
        %772 = vmatprep.subr.mxu0 0.0
        %773 = vmatpush1.msra.mxu0 0.0
        %774 = vmatprep.subr.mxu0 0.0
        %775 = vmatpush1.msra.mxu0 0.0
        %776 = vmatprep.subr.mxu0 0.0
        %777 = vmatpush1.msra.mxu0 0.0
        %778 = vmatprep.subr.mxu0 0.0
        %779 = vmatpush1.msra.mxu0 0.0
        %780 = vmatprep.subr.mxu0 0.0
        %781 = vmatpush1.msra.mxu0 0.0
        %782 = vmatprep.subr.mxu0 0.0
        %783 = vmatpush1.msra.mxu0 0.0
        %784 = vmatprep.subr.mxu0 0.0
        %785 = vmatpush1.msra.mxu0 0.0
        %786 = vmatprep.subr.mxu0 0.0
        %787 = vmatpush1.msra.mxu0 0.0
        %788 = vmatprep.subr.mxu0 0.0
        %789 = vmatpush1.msra.mxu0 0.0
        %790 = vmatprep.subr.mxu0 0.0
        %791 = vmatpush1.msra.mxu0 0.0
        %792 = vmatprep.subr.mxu0 0.0
        %793 = vmatpush1.msra.mxu0 0.0
        %794 = vmatprep.subr.mxu0 0.0
        %795 = vmatpush1.msra.mxu0 0.0
        %796 = vmatprep.subr.mxu0 0.0
        %797 = vmatpush1.msra.mxu0 0.0
        %798 = vmatprep.subr.mxu0 0.0
        %799 = vmatpush1.msra.mxu0 0.0
        %800 = vmatprep.subr.mxu0 0.0
        %801 = vmatpush1.msra.mxu0 0.0
        %802 = vmatprep.subr.mxu0 0.0
        %803 = vmatpush1.msra.mxu0 0.0
        %804 = vmatprep.subr.mxu0 0.0
        %805 = vmatpush1.msra.mxu0 0.0
        %806 = vmatprep.subr.mxu0 0.0
        %807 = vmatpush1.msra.mxu0 0.0
        %808 = vmatprep.subr.mxu0 0.0
        %809 = vmatpush1.msra.mxu0 0.0
        %810 = vmatprep.subr.mxu0 0.0
        %811 = vmatpush1.msra.mxu0 0.0
        %812 = vmatprep.subr.mxu0 0.0
        %813 = vmatpush1.msra.mxu0 0.0
        %814 = vmatprep.subr.mxu0 0.0
        %815 = vmatpush1.msra.mxu0 0.0
        %816 = vmatprep.subr.mxu0 0.0
        %817 = vmatpush1.msra.mxu0 0.0
        %818 = vmatprep.subr.mxu0 0.0
        %819 = vmatpush1.msra.mxu0 0.0
        %820 = vmatprep.subr.mxu0 0.0
        %821 = vmatpush1.msra.mxu0 0.0
        %822 = vmatprep.subr.mxu0 0.0
        %823 = vmatpush1.msra.mxu0 0.0
        %824 = vmatprep.subr.mxu0 0.0
        %825 = vmatpush1.msra.mxu0 0.0
        %826 = vmatprep.subr.mxu0 0.0
        %827 = vmatpush1.msra.mxu0 0.0
        %828 = vmatprep.subr.mxu0 0.0
        %829 = vmatpush1.msra.mxu0 0.0
        %830 = vmatprep.mubr.f32.mxu0 0.0
        %831 = vmatmul.mubr.f32.gmra.mrb[0].mxu0 %v506
        %v832 = vpop.f32.mrb[0].mxu0
        %v833 = vadd.f32 %v502, %v832
        %v834 = vpop.f32.mrb[0].mxu0
        %835 = vdwg.mxu0
        %v836 = vadd.f32 %v761, %v833
        %v837 = vmax.f32 %v836, 0.0
        %s838 = scalar_lea.vmem %s272, 8 [#allocation2]
        %839 = vst.msk [vmem:[%s838] sm:$0xff] %vm582, %v837
        %s840 = sand.u32 %s181, 1
        %s841 = scalar_lea.sflag [#allocation3], %s840
        %s842 = sand.u32 %s181, 1
        %s843 = smul.addr %s842, 16
        %s844 = scalar_lea.vmem [#allocation2], %s843
        // Predicated region
        $region49: #{tpu_custom_call.1} parent=47 // pred_check
          %p845 = pneg %p191
        $region50: #{tpu_custom_call.1} parent=47 // pred_check_branch
          %847 = sbr.rel (%p845) target = $region52
        $region51: #{tpu_custom_call.1} parent=47 // pred_region
          %s848 = smul.u32 2, %s21
          %s850 = ssub.s32 256, 256
          %851 = vsyncadd %s841, %s850
          %s852 = smul.addr %s848, 128
          %s853 = scalar_lea.hbm %s7, %s852
          %s854 = sshll.u32 %s844, 4
          %s855 = int_to_ptr.vmem [resolvable:$true] %s854
          %860 = dma.vmem_to_hbm [thread:$0]  %s855, 256, %s853, %s841, 128, 128, 8
        $region52: #{tpu_custom_call.1} parent=47 // pred_fallthru
          _
      $region48: #{tpu_custom_call.1} parent=5 // pred_fallthru
        _
      %p861 = scmp.le.s32.totalorder 2, %s16
      // Predicated region
      $region53: #{tpu_custom_call.1} parent=5 // pred_check
        %p862 = pneg %p861
      $region54: #{tpu_custom_call.1} parent=5 // pred_check_branch
        %864 = sbr.rel (%p862) target = $region56
      $region55: #{tpu_custom_call.1} parent=5 // pred_region
        %s865 = ssub.s32 %s16, 2
        // Predicated region
        $region57: #{tpu_custom_call.1} parent=55 // pred_check
          %p866 = pneg %p197
        $region58: #{tpu_custom_call.1} parent=55 // pred_check_branch
          %868 = sbr.rel (%p866) target = $region60
        $region59: #{tpu_custom_call.1} parent=55 // pred_region
          %s869 = sand.u32 %s182, 1
          %s870 = scalar_lea.sflag [#allocation3], %s869
          %s871 = sand.u32 %s182, 1
          %s872 = smul.addr %s871, 16
          %s873 = scalar_lea.vmem [#allocation2], %s872
          %874 = dma.done %s870, 256
        $region60: #{tpu_custom_call.1} parent=55 // pred_fallthru
          _
      $region56: #{tpu_custom_call.1} parent=5 // pred_fallthru
        _
    $region6: #{tpu_custom_call.1} parent=1 // loop_footer
      %s20 = sadd.s32 1, %s16
    $region7: #{tpu_custom_call.1} parent=1 // loop_footer_branch
      %15 = sbr.rel target = $region3
    $region8: #{tpu_custom_call.1} parent=1 // loop_exit
      _
    %875 = vsyncpa [#allocation3], 1
    %s876 = scalar_lea.sflag [#allocation3], 1
    %877 = vsyncpa %s876, 1

// kernel: tpu_custom_call.1
$region0: #{tpu_custom_call.1}
  #allocation0 [shape = 'u32[]', space=smem, size = 0x4, offset = 0x4, fixed_abs, tag = 'smem constant byte address 0x4 - core index']
  #allocation1 [shape = 'u32[144,128]{1,0:T(1,128)}', space=vmem, size = 0x12000, scoped, tag = 'internal scratch']
  %s0 = inlined_call_operand.vmem [shape: f32[4,4,16], index: 0, kind: input, shape index: {}]
  %s1 = inlined_call_operand.vmem [shape: f32[8,12], index: 1, kind: input, shape index: {}]
  %s2 = inlined_call_operand.vmem [shape: f32[8,1], index: 2, kind: input, shape index: {}]
  %s3 = inlined_call_operand.vmem [shape: f32[8,24], index: 3, kind: input, shape index: {}]
  %s4 = inlined_call_operand.vmem [shape: f32[8,1], index: 4, kind: input, shape index: {}]
  %s5 = inlined_call_operand.vmem [shape: f32[8,4], index: 5, kind: input, shape index: {}]
  %s6 = inlined_call_operand.vmem [shape: f32[8,1], index: 6, kind: input, shape index: {}]
  %s7 = inlined_call_operand.hbm [shape: f32[4,8,16], index: 7, kind: output, shape index: {}]
  %s8 = sld [smem:[#allocation0]]
  $region61: #{tpu_custom_call.1} parent=0
    _
  %s10 = ssub.s32 1, %s8
  %s11 = scalar_select 0, %s10, %s8
  $region1: #{tpu_custom_call.1} parent=0
    #allocation2 [shape = 'u8[16384]{0}', space=vmem, size = 0x4000, scoped, tag = 'output window, operand 0']
    #allocation3 [shape = 's32[2]{0}', space=sflag, size = 0x8, scoped, tag = 'scoped memory for tpu_custom_call.1']
    %12 = vsyncpa [#allocation3], 0
    %s13 = scalar_lea.sflag [#allocation3], 1
    %14 = vsyncpa %s13, 0
    loop: start=0, step=1, limit=4
    $region2: #{tpu_custom_call.1} parent=1 // loop_pre_header
      _
    $region3: #{tpu_custom_call.1} parent=1 // loop_header
      %s16 = sphi 0, %s20
      %p17 = scmp.ge.s32.totalorder %s16, 4
      %s26 = sphi 0, %s28
      %s29 = sphi 0, %s26
      %s30 = sphi 0, %s29
      %s46 = sphi 0, %s30
      %s50 = sphi 0, %s50
      %s52 = sphi 0, %s50
      %s53 = sphi 0, %s52
      %s67 = sphi 0, %s53
      %s71 = sphi 0, %s71
      %s73 = sphi 0, %s71
      %s74 = sphi 0, %s73
      %s88 = sphi 0, %s74
      %s92 = sphi 0, %s92
      %s94 = sphi 0, %s92
      %s95 = sphi 0, %s94
      %s109 = sphi 0, %s95
      %s113 = sphi 0, %s113
      %s115 = sphi 0, %s113
      %s116 = sphi 0, %s115
      %s130 = sphi 0, %s116
      %s134 = sphi 0, %s134
      %s136 = sphi 0, %s134
      %s137 = sphi 0, %s136
      %s151 = sphi 0, %s137
      %s155 = sphi 0, %s155
      %s157 = sphi 0, %s155
      %s158 = sphi 0, %s157
      %s172 = sphi 0, %s158
      %s178 = sphi 0, %s180
      %s181 = sphi 0, %s178
      %s182 = sphi 0, %s181
      %s198 = sphi 0, %s182
    $region4: #{tpu_custom_call.1} parent=1 // loop_header_branch
      %19 = sbr.rel (%p17) target = $region8
    $region5: #{tpu_custom_call.1} parent=1 // loop_body
      %s21 = ssub.s32 %s16, 1
      %s22 = ssub.s32 %s16, 2
      %s23 = sadd.s32 %s16, 1
      %s24 = ssub.s32 %s16, %s23
      %p25 = scmp.eq.s32.totalorder %s24, 0
      %s27 = sadd.s32 %s26, 1
      %s28 = scalar_select %p25, %s26, %s27
      %p31 = pneg %p25
      %p32 = scmp.eq.s32.totalorder %s16, 1
      %p33 = por %p31, %p32
      %p34 = scmp.ne.s32.totalorder %s26, %s29
      %p35 = scmp.eq.s32.totalorder %s16, 0
      %p36 = por %p34, %p35
      %p37 = scmp.ne.s32.totalorder %s26, %s29
      %p38 = scmp.eq.s32.totalorder %s21, 1
      %p39 = por %p37, %p38
      %p40 = scmp.ne.s32.totalorder %s29, %s30
      %p41 = scmp.eq.s32.totalorder %s21, 0
      %p42 = por %p40, %p41
      %p43 = scmp.ne.s32.totalorder %s29, %s30
      %p44 = scmp.eq.s32.totalorder %s22, 1
      %p45 = por %p43, %p44
      %p47 = scmp.ne.s32.totalorder %s30, %s46
      %p48 = scmp.eq.s32.totalorder %s22, 0
      %p49 = por %p47, %p48
      %s51 = sadd.s32 %s50, 1
      %p54 = scmp.eq.s32.totalorder %s16, 1
      %p55 = scmp.ne.s32.totalorder %s50, %s52
      %p56 = scmp.eq.s32.totalorder %s16, 0
      %p57 = por %p55, %p56
      %p58 = scmp.ne.s32.totalorder %s50, %s52
      %p59 = scmp.eq.s32.totalorder %s21, 1
      %p60 = por %p58, %p59
      %p61 = scmp.ne.s32.totalorder %s52, %s53
      %p62 = scmp.eq.s32.totalorder %s21, 0
      %p63 = por %p61, %p62
      %p64 = scmp.ne.s32.totalorder %s52, %s53
      %p65 = scmp.eq.s32.totalorder %s22, 1
      %p66 = por %p64, %p65
      %p68 = scmp.ne.s32.totalorder %s53, %s67
      %p69 = scmp.eq.s32.totalorder %s22, 0
      %p70 = por %p68, %p69
      %s72 = sadd.s32 %s71, 1
      %p75 = scmp.eq.s32.totalorder %s16, 1
      %p76 = scmp.ne.s32.totalorder %s71, %s73
      %p77 = scmp.eq.s32.totalorder %s16, 0
      %p78 = por %p76, %p77
      %p79 = scmp.ne.s32.totalorder %s71, %s73
      %p80 = scmp.eq.s32.totalorder %s21, 1
      %p81 = por %p79, %p80
      %p82 = scmp.ne.s32.totalorder %s73, %s74
      %p83 = scmp.eq.s32.totalorder %s21, 0
      %p84 = por %p82, %p83
      %p85 = scmp.ne.s32.totalorder %s73, %s74
      %p86 = scmp.eq.s32.totalorder %s22, 1
      %p87 = por %p85, %p86
      %p89 = scmp.ne.s32.totalorder %s74, %s88
      %p90 = scmp.eq.s32.totalorder %s22, 0
      %p91 = por %p89, %p90
      %s93 = sadd.s32 %s92, 1
      %p96 = scmp.eq.s32.totalorder %s16, 1
      %p97 = scmp.ne.s32.totalorder %s92, %s94
      %p98 = scmp.eq.s32.totalorder %s16, 0
      %p99 = por %p97, %p98
      %p100 = scmp.ne.s32.totalorder %s92, %s94
      %p101 = scmp.eq.s32.totalorder %s21, 1
      %p102 = por %p100, %p101
      %p103 = scmp.ne.s32.totalorder %s94, %s95
      %p104 = scmp.eq.s32.totalorder %s21, 0
      %p105 = por %p103, %p104
      %p106 = scmp.ne.s32.totalorder %s94, %s95
      %p107 = scmp.eq.s32.totalorder %s22, 1
      %p108 = por %p106, %p107
      %p110 = scmp.ne.s32.totalorder %s95, %s109
      %p111 = scmp.eq.s32.totalorder %s22, 0
      %p112 = por %p110, %p111
      %s114 = sadd.s32 %s113, 1
      %p117 = scmp.eq.s32.totalorder %s16, 1
      %p118 = scmp.ne.s32.totalorder %s113, %s115
      %p119 = scmp.eq.s32.totalorder %s16, 0
      %p120 = por %p118, %p119
      %p121 = scmp.ne.s32.totalorder %s113, %s115
      %p122 = scmp.eq.s32.totalorder %s21, 1
      %p123 = por %p121, %p122
      %p124 = scmp.ne.s32.totalorder %s115, %s116
      %p125 = scmp.eq.s32.totalorder %s21, 0
      %p126 = por %p124, %p125
      %p127 = scmp.ne.s32.totalorder %s115, %s116
      %p128 = scmp.eq.s32.totalorder %s22, 1
      %p129 = por %p127, %p128
      %p131 = scmp.ne.s32.totalorder %s116, %s130
      %p132 = scmp.eq.s32.totalorder %s22, 0
      %p133 = por %p131, %p132
      %s135 = sadd.s32 %s134, 1
      %p138 = scmp.eq.s32.totalorder %s16, 1
      %p139 = scmp.ne.s32.totalorder %s134, %s136
      %p140 = scmp.eq.s32.totalorder %s16, 0
      %p141 = por %p139, %p140
      %p142 = scmp.ne.s32.totalorder %s134, %s136
      %p143 = scmp.eq.s32.totalorder %s21, 1
      %p144 = por %p142, %p143
      %p145 = scmp.ne.s32.totalorder %s136, %s137
      %p146 = scmp.eq.s32.totalorder %s21, 0
      %p147 = por %p145, %p146
      %p148 = scmp.ne.s32.totalorder %s136, %s137
      %p149 = scmp.eq.s32.totalorder %s22, 1
      %p150 = por %p148, %p149
      %p152 = scmp.ne.s32.totalorder %s137, %s151
      %p153 = scmp.eq.s32.totalorder %s22, 0
      %p154 = por %p152, %p153
      %s156 = sadd.s32 %s155, 1
      %p159 = scmp.eq.s32.totalorder %s16, 1
      %p160 = scmp.ne.s32.totalorder %s155, %s157
      %p161 = scmp.eq.s32.totalorder %s16, 0
      %p162 = por %p160, %p161
      %p163 = scmp.ne.s32.totalorder %s155, %s157
      %p164 = scmp.eq.s32.totalorder %s21, 1
      %p165 = por %p163, %p164
      %p166 = scmp.ne.s32.totalorder %s157, %s158
      %p167 = scmp.eq.s32.totalorder %s21, 0
      %p168 = por %p166, %p167
      %p169 = scmp.ne.s32.totalorder %s157, %s158
      %p170 = scmp.eq.s32.totalorder %s22, 1
      %p171 = por %p169, %p170
      %p173 = scmp.ne.s32.totalorder %s158, %s172
      %p174 = scmp.eq.s32.totalorder %s22, 0
      %p175 = por %p173, %p174
      %s176 = ssub.s32 %s16, %s23
      %p177 = scmp.eq.s32.totalorder %s176, 0
      %s179 = sadd.s32 %s178, 1
      %s180 = scalar_select %p177, %s178, %s179
      %p183 = pneg %p177
      %p184 = scmp.eq.s32.totalorder %s16, 1
      %p185 = por %p183, %p184
      %p186 = scmp.ne.s32.totalorder %s178, %s181
      %p187 = scmp.eq.s32.totalorder %s16, 0
      %p188 = por %p186, %p187
      %p189 = scmp.ne.s32.totalorder %s178, %s181
      %p190 = scmp.eq.s32.totalorder %s21, 1
      %p191 = por %p189, %p190
      %p192 = scmp.ne.s32.totalorder %s181, %s182
      %p193 = scmp.eq.s32.totalorder %s21, 0
      %p194 = por %p192, %p193
      %p195 = scmp.ne.s32.totalorder %s181, %s182
      %p196 = scmp.eq.s32.totalorder %s22, 1
      %p197 = por %p195, %p196
      %p199 = scmp.ne.s32.totalorder %s182, %s198
      %p200 = scmp.eq.s32.totalorder %s22, 0
      %p201 = por %p199, %p200
      %p202 = scmp.le.s32.totalorder 1, %s16
      %p203 = scmp.lt.s32.totalorder %s16, 3
      %p204 = pnand %p202, %p203
      %p205 = pneg %p204
      // Predicated region
      $region9: #{tpu_custom_call.1} parent=5 // pred_check
        _
      $region10: #{tpu_custom_call.1} parent=5 // pred_check_branch
        %207 = sbr.rel (%p204) target = $region12
      $region11: #{tpu_custom_call.1} parent=5 // pred_region
        %s208 = ssub.s32 %s16, 1
        // Predicated region
        $region13: #{tpu_custom_call.1} parent=11 // pred_check
          %p209 = pneg %p63
        $region14: #{tpu_custom_call.1} parent=11 // pred_check_branch
          %211 = sbr.rel (%p209) target = $region16
        $region15: #{tpu_custom_call.1} parent=11 // pred_region
          _
        $region16: #{tpu_custom_call.1} parent=11 // pred_fallthru
          _
        // Predicated region
        $region17: #{tpu_custom_call.1} parent=11 // pred_check
          %p212 = pneg %p84
        $region18: #{tpu_custom_call.1} parent=11 // pred_check_branch
          %214 = sbr.rel (%p212) target = $region20
        $region19: #{tpu_custom_call.1} parent=11 // pred_region
          _
        $region20: #{tpu_custom_call.1} parent=11 // pred_fallthru
          _
        // Predicated region
        $region21: #{tpu_custom_call.1} parent=11 // pred_check
          %p215 = pneg %p105
        $region22: #{tpu_custom_call.1} parent=11 // pred_check_branch
          %217 = sbr.rel (%p215) target = $region24
        $region23: #{tpu_custom_call.1} parent=11 // pred_region
          _
        $region24: #{tpu_custom_call.1} parent=11 // pred_fallthru
          _
        // Predicated region
        $region25: #{tpu_custom_call.1} parent=11 // pred_check
          %p218 = pneg %p126
        $region26: #{tpu_custom_call.1} parent=11 // pred_check_branch
          %220 = sbr.rel (%p218) target = $region28
        $region27: #{tpu_custom_call.1} parent=11 // pred_region
          _
        $region28: #{tpu_custom_call.1} parent=11 // pred_fallthru
          _
        // Predicated region
        $region29: #{tpu_custom_call.1} parent=11 // pred_check
          %p221 = pneg %p147
        $region30: #{tpu_custom_call.1} parent=11 // pred_check_branch
          %223 = sbr.rel (%p221) target = $region32
        $region31: #{tpu_custom_call.1} parent=11 // pred_region
          _
        $region32: #{tpu_custom_call.1} parent=11 // pred_fallthru
          _
        // Predicated region
        $region33: #{tpu_custom_call.1} parent=11 // pred_check
          %p224 = pneg %p168
        $region34: #{tpu_custom_call.1} parent=11 // pred_check_branch
          %226 = sbr.rel (%p224) target = $region36
        $region35: #{tpu_custom_call.1} parent=11 // pred_region
          _
        $region36: #{tpu_custom_call.1} parent=11 // pred_fallthru
          _
      $region12: #{tpu_custom_call.1} parent=5 // pred_fallthru
        _
      %p227 = scmp.lt.s32.totalorder %s16, 2
      // Predicated region
      $region37: #{tpu_custom_call.1} parent=5 // pred_check
        %p228 = pneg %p227
      $region38: #{tpu_custom_call.1} parent=5 // pred_check_branch
        %230 = sbr.rel (%p228) target = $region40
      $region39: #{tpu_custom_call.1} parent=5 // pred_region
        // Predicated region
        $region41: #{tpu_custom_call.1} parent=39 // pred_check
          %p231 = pneg %p36
        $region42: #{tpu_custom_call.1} parent=39 // pred_check_branch
          %233 = sbr.rel (%p231) target = $region44
        $region43: #{tpu_custom_call.1} parent=39 // pred_region
          %s234 = smul.u32 2, %s16
          %p235 = scmp.lt.s32.totalorder %s234, 3
          %s236 = scalar_select %p235, %s234, 3
          %s237 = smul.addr %s236, 4
          %s238 = scalar_lea.vmem %s0, %s237
          %s239 = smul.u32 2, %s16
        $region44: #{tpu_custom_call.1} parent=39 // pred_fallthru
          _
      $region40: #{tpu_custom_call.1} parent=5 // pred_fallthru
        _
      %p240 = scmp.le.s32.totalorder 1, %s16
      %p241 = scmp.lt.s32.totalorder %s16, 3
      %p242 = pnand %p240, %p241
      %p243 = pneg %p242
      // Predicated region
      $region45: #{tpu_custom_call.1} parent=5 // pred_check
        _
      $region46: #{tpu_custom_call.1} parent=5 // pred_check_branch
        %245 = sbr.rel (%p242) target = $region48
      $region47: #{tpu_custom_call.1} parent=5 // pred_region
        %s246 = ssub.s32 %s16, 1
        %s247 = smul.u32 2, %s21
        %p248 = scmp.lt.s32.totalorder %s247, 3
        %s249 = scalar_select %p248, %s247, 3
        %s250 = smul.addr %s249, 4
        %s251 = scalar_lea.vmem %s0, %s250
        %p252 = pneg %p42
        %p253 = pneg %p39
        %p254 = pneg %p63
        %p255 = pneg %p60
        %p256 = pneg %p84
        %p257 = pneg %p81
        %p258 = pneg %p105
        %p259 = pneg %p102
        %p260 = pneg %p126
        %p261 = pneg %p123
        %p262 = pneg %p147
        %p263 = pneg %p144
        %p264 = pneg %p168
        %p265 = pneg %p165
        %p266 = pneg %p194
        %p267 = pneg %p191
        %s268 = sand.u32 %s181, 1
        %s269 = scalar_lea.sflag [#allocation3], %s268
        %s270 = sand.u32 %s181, 1
        %s271 = smul.addr %s270, 16
        %s272 = scalar_lea.vmem [#allocation2], %s271
        %s273 = smul.u32 2, %s21
        %p274 = scmp.lt.s32.totalorder %s273, 3
        %s275 = scalar_select %p274, %s273, 3
        %s276 = smul.addr %s275, 4
        %s277 = scalar_lea.vmem %s0, %s276
        %s278 = smul.u32 2, %s21
        %s279 = smul.u32 2, %s21
        %v280 = vlaneseq
        %v281 = vand.u32 %v280, 127
        %v282 = vadd.s32 %v281, 4294967295
        %vm283 = vcmp.ge.s32.totalorder %v282, 0
        %vm284 = vcmp.lt.s32.totalorder %v282, 16
        %vm285 = vmand %vm283, %vm284
        %v286 = vadd.s32 %v281, 1
        %vm287 = vcmp.ge.s32.totalorder %v286, 0
        %vm288 = vcmp.lt.s32.totalorder %v286, 16
        %vm289 = vmand %vm287, %vm288
        %v290 = vld [vmem:[%s1] sm:$0xff]
        %v291 = vld [vmem:[%s3] sm:$0xff]
        %v292 = vld [vmem:[%s2] sm:$0xff]
        %v293 = vld [vmem:[%s4] sm:$0xff]
        %v294 = vld [vmem:[%s5] sm:$0xff]
        %v295 = vld [vmem:[%s6] sm:$0xff]
        %v296 = vld [vmem:[%s277] sm:$0xf]
        %vm297 = vcmask 1047680
        %298 = vrot.lane.b32.xlu0 %v296, 16
        %v299 = vpop.permute.xlu0 %298
        %v300 = vsel %vm297, %v299, %v296
        %301 = vrot.lane.b32.xlu0 %v300, 16
        %v302 = vpop.permute.xlu0 %301
        %v303 = vsel %vm297, %v302, %v296
        %v304 = vsel %vm285, 1, 0
        %vm305 = vcmp.eq.s32.totalorder %v304, 1
        %307 = vrot.lane.b32.xlu0 %v303, 113
        %v308 = vpop.permute.xlu0 %307
        %v310 = vsel %vm305, %v308, 0.0
        %v311 = vsel %vm289, 1, 0
        %vm312 = vcmp.eq.s32.totalorder %v311, 1
        %313 = vrot.lane.b32.xlu0 %v303, 127
        %v314 = vpop.permute.xlu0 %313
        %v316 = vsel %vm312, %v314, 0.0
        %v318 = vrot.slane %v296, 4
        %vm320 = vcmask 1043456
        %v321 = vsel %vm320, %v310, %v318
        %323 = vset.pattern.permute.xlu0 0
        %324 = vperm.xlu0 %323, %v292
        %v325 = vpop.permute.xlu0 %324
        %vm327 = vcmask 97280
        %v329 = vsel %vm327, %v290, 0
        %v332 = vsel %vm320, %v316, 0
        %334 = vmatprep.subr.mxu0 0.0
        %335 = vmatpush1.msra.mxu0 %v321
        %336 = vmatprep.subr.mxu0 0.0
        %337 = vmatpush1.msra.mxu0 %v332
        %338 = vmatprep.subr.mxu0 0.0
        %339 = vmatpush1.msra.mxu0 0.0
        %340 = vmatprep.subr.mxu0 0.0
        %341 = vmatpush1.msra.mxu0 0.0
        %342 = vmatprep.subr.mxu0 0.0
        %343 = vmatpush1.msra.mxu0 0.0
        %344 = vmatprep.subr.mxu0 0.0
        %345 = vmatpush1.msra.mxu0 0.0
        %346 = vmatprep.subr.mxu0 0.0
        %347 = vmatpush1.msra.mxu0 0.0
        %348 = vmatprep.subr.mxu0 0.0
        %349 = vmatpush1.msra.mxu0 0.0
        %350 = vmatprep.subr.mxu0 0.0
        %351 = vmatpush1.msra.mxu0 0.0
        %352 = vmatprep.subr.mxu0 0.0
        %353 = vmatpush1.msra.mxu0 0.0
        %354 = vmatprep.subr.mxu0 0.0
        %355 = vmatpush1.msra.mxu0 0.0
        %356 = vmatprep.subr.mxu0 0.0
        %357 = vmatpush1.msra.mxu0 0.0
        %358 = vmatprep.subr.mxu0 0.0
        %359 = vmatpush1.msra.mxu0 0.0
        %360 = vmatprep.subr.mxu0 0.0
        %361 = vmatpush1.msra.mxu0 0.0
        %362 = vmatprep.subr.mxu0 0.0
        %363 = vmatpush1.msra.mxu0 0.0
        %364 = vmatprep.subr.mxu0 0.0
        %365 = vmatpush1.msra.mxu0 0.0
        %366 = vmatprep.subr.mxu0 0.0
        %367 = vmatpush1.msra.mxu0 0.0
        %368 = vmatprep.subr.mxu0 0.0
        %369 = vmatpush1.msra.mxu0 0.0
        %370 = vmatprep.subr.mxu0 0.0
        %371 = vmatpush1.msra.mxu0 0.0
        %372 = vmatprep.subr.mxu0 0.0
        %373 = vmatpush1.msra.mxu0 0.0
        %374 = vmatprep.subr.mxu0 0.0
        %375 = vmatpush1.msra.mxu0 0.0
        %376 = vmatprep.subr.mxu0 0.0
        %377 = vmatpush1.msra.mxu0 0.0
        %378 = vmatprep.subr.mxu0 0.0
        %379 = vmatpush1.msra.mxu0 0.0
        %380 = vmatprep.subr.mxu0 0.0
        %381 = vmatpush1.msra.mxu0 0.0
        %382 = vmatprep.subr.mxu0 0.0
        %383 = vmatpush1.msra.mxu0 0.0
        %384 = vmatprep.subr.mxu0 0.0
        %385 = vmatpush1.msra.mxu0 0.0
        %386 = vmatprep.subr.mxu0 0.0
        %387 = vmatpush1.msra.mxu0 0.0
        %388 = vmatprep.subr.mxu0 0.0
        %389 = vmatpush1.msra.mxu0 0.0
        %390 = vmatprep.subr.mxu0 0.0
        %391 = vmatpush1.msra.mxu0 0.0
        %392 = vmatprep.subr.mxu0 0.0
        %393 = vmatpush1.msra.mxu0 0.0
        %394 = vmatprep.subr.mxu0 0.0
        %395 = vmatpush1.msra.mxu0 0.0
        %396 = vmatprep.subr.mxu0 0.0
        %397 = vmatpush1.msra.mxu0 0.0
        %398 = vmatprep.mubr.f32.mxu0 0.0
        %399 = vmatmul.mubr.f32.gmra.mrb[0].mxu0 %v329
        %v400 = vpop.f32.mrb[0].mxu0
        %v401 = vadd.f32 %v325, %v400
        %v402 = vpop.f32.mrb[0].mxu0
        %403 = vdwg.mxu0
        %v404 = vmax.f32 %v401, 0.0
        %405 = vrot.lane.b32.xlu0 %v404, 16
        %v406 = vpop.permute.xlu0 %405
        %v407 = vsel %vm297, %v406, %v404
        %408 = vrot.lane.b32.xlu0 %v407, 16
        %v409 = vpop.permute.xlu0 %408
        %v410 = vsel %vm297, %v409, %v404
        %412 = vrot.lane.b32.xlu0 %v410, 113
        %v413 = vpop.permute.xlu0 %412
        %v415 = vsel %vm305, %v413, 0.0
        %416 = vrot.lane.b32.xlu0 %v410, 127
        %v417 = vpop.permute.xlu0 %416
        %v419 = vsel %vm312, %v417, 0.0
        %421 = vset.pattern.permute.xlu0 0
        %422 = vperm.xlu0 %421, %v293
        %v423 = vpop.permute.xlu0 %422
        %vm425 = vcmask 195584
        %v427 = vsel %vm425, %v291, 0
        %429 = vmatprep.subr.mxu0 0.0
        %430 = vmatpush1.msra.mxu0 %v415
        %431 = vmatprep.subr.mxu0 0.0
        %432 = vmatpush1.msra.mxu0 %v404
        %433 = vmatprep.subr.mxu0 0.0
        %434 = vmatpush1.msra.mxu0 %v419
        %435 = vmatprep.subr.mxu0 0.0
        %436 = vmatpush1.msra.mxu0 0.0
        %437 = vmatprep.subr.mxu0 0.0
        %438 = vmatpush1.msra.mxu0 0.0
        %439 = vmatprep.subr.mxu0 0.0
        %440 = vmatpush1.msra.mxu0 0.0
        %441 = vmatprep.subr.mxu0 0.0
        %442 = vmatpush1.msra.mxu0 0.0
        %443 = vmatprep.subr.mxu0 0.0
        %444 = vmatpush1.msra.mxu0 0.0
        %445 = vmatprep.subr.mxu0 0.0
        %446 = vmatpush1.msra.mxu0 0.0
        %447 = vmatprep.subr.mxu0 0.0
        %448 = vmatpush1.msra.mxu0 0.0
        %449 = vmatprep.subr.mxu0 0.0
        %450 = vmatpush1.msra.mxu0 0.0
        %451 = vmatprep.subr.mxu0 0.0
        %452 = vmatpush1.msra.mxu0 0.0
        %453 = vmatprep.subr.mxu0 0.0
        %454 = vmatpush1.msra.mxu0 0.0
        %455 = vmatprep.subr.mxu0 0.0
        %456 = vmatpush1.msra.mxu0 0.0
        %457 = vmatprep.subr.mxu0 0.0
        %458 = vmatpush1.msra.mxu0 0.0
        %459 = vmatprep.subr.mxu0 0.0
        %460 = vmatpush1.msra.mxu0 0.0
        %461 = vmatprep.subr.mxu0 0.0
        %462 = vmatpush1.msra.mxu0 0.0
        %463 = vmatprep.subr.mxu0 0.0
        %464 = vmatpush1.msra.mxu0 0.0
        %465 = vmatprep.subr.mxu0 0.0
        %466 = vmatpush1.msra.mxu0 0.0
        %467 = vmatprep.subr.mxu0 0.0
        %468 = vmatpush1.msra.mxu0 0.0
        %469 = vmatprep.subr.mxu0 0.0
        %470 = vmatpush1.msra.mxu0 0.0
        %471 = vmatprep.subr.mxu0 0.0
        %472 = vmatpush1.msra.mxu0 0.0
        %473 = vmatprep.subr.mxu0 0.0
        %474 = vmatpush1.msra.mxu0 0.0
        %475 = vmatprep.subr.mxu0 0.0
        %476 = vmatpush1.msra.mxu0 0.0
        %477 = vmatprep.subr.mxu0 0.0
        %478 = vmatpush1.msra.mxu0 0.0
        %479 = vmatprep.subr.mxu0 0.0
        %480 = vmatpush1.msra.mxu0 0.0
        %481 = vmatprep.subr.mxu0 0.0
        %482 = vmatpush1.msra.mxu0 0.0
        %483 = vmatprep.subr.mxu0 0.0
        %484 = vmatpush1.msra.mxu0 0.0
        %485 = vmatprep.subr.mxu0 0.0
        %486 = vmatpush1.msra.mxu0 0.0
        %487 = vmatprep.subr.mxu0 0.0
        %488 = vmatpush1.msra.mxu0 0.0
        %489 = vmatprep.subr.mxu0 0.0
        %490 = vmatpush1.msra.mxu0 0.0
        %491 = vmatprep.subr.mxu0 0.0
        %492 = vmatpush1.msra.mxu0 0.0
        %493 = vmatprep.mubr.f32.mxu0 0.0
        %494 = vmatmul.mubr.f32.gmra.mrb[0].mxu0 %v427
        %v495 = vpop.f32.mrb[0].mxu0
        %v496 = vadd.f32 %v423, %v495
        %v497 = vpop.f32.mrb[0].mxu0
        %498 = vdwg.mxu0
        %500 = vset.pattern.permute.xlu0 0
        %501 = vperm.xlu0 %500, %v295
        %v502 = vpop.permute.xlu0 %501
        %vm504 = vcmask 31744
        %v506 = vsel %vm504, %v294, 0
        %v508 = vsel %vm320, %v296, 0
        %510 = vmatprep.subr.mxu0 0.0
        %511 = vmatpush1.msra.mxu0 %v508
        %512 = vmatprep.subr.mxu0 0.0
        %513 = vmatpush1.msra.mxu0 0.0
        %514 = vmatprep.subr.mxu0 0.0
        %515 = vmatpush1.msra.mxu0 0.0
        %516 = vmatprep.subr.mxu0 0.0
        %517 = vmatpush1.msra.mxu0 0.0
        %518 = vmatprep.subr.mxu0 0.0
        %519 = vmatpush1.msra.mxu0 0.0
        %520 = vmatprep.subr.mxu0 0.0
        %521 = vmatpush1.msra.mxu0 0.0
        %522 = vmatprep.subr.mxu0 0.0
        %523 = vmatpush1.msra.mxu0 0.0
        %524 = vmatprep.subr.mxu0 0.0
        %525 = vmatpush1.msra.mxu0 0.0
        %526 = vmatprep.subr.mxu0 0.0
        %527 = vmatpush1.msra.mxu0 0.0
        %528 = vmatprep.subr.mxu0 0.0
        %529 = vmatpush1.msra.mxu0 0.0
        %530 = vmatprep.subr.mxu0 0.0
        %531 = vmatpush1.msra.mxu0 0.0
        %532 = vmatprep.subr.mxu0 0.0
        %533 = vmatpush1.msra.mxu0 0.0
        %534 = vmatprep.subr.mxu0 0.0
        %535 = vmatpush1.msra.mxu0 0.0
        %536 = vmatprep.subr.mxu0 0.0
        %537 = vmatpush1.msra.mxu0 0.0
        %538 = vmatprep.subr.mxu0 0.0
        %539 = vmatpush1.msra.mxu0 0.0
        %540 = vmatprep.subr.mxu0 0.0
        %541 = vmatpush1.msra.mxu0 0.0
        %542 = vmatprep.subr.mxu0 0.0
        %543 = vmatpush1.msra.mxu0 0.0
        %544 = vmatprep.subr.mxu0 0.0
        %545 = vmatpush1.msra.mxu0 0.0
        %546 = vmatprep.subr.mxu0 0.0
        %547 = vmatpush1.msra.mxu0 0.0
        %548 = vmatprep.subr.mxu0 0.0
        %549 = vmatpush1.msra.mxu0 0.0
        %550 = vmatprep.subr.mxu0 0.0
        %551 = vmatpush1.msra.mxu0 0.0
        %552 = vmatprep.subr.mxu0 0.0
        %553 = vmatpush1.msra.mxu0 0.0
        %554 = vmatprep.subr.mxu0 0.0
        %555 = vmatpush1.msra.mxu0 0.0
        %556 = vmatprep.subr.mxu0 0.0
        %557 = vmatpush1.msra.mxu0 0.0
        %558 = vmatprep.subr.mxu0 0.0
        %559 = vmatpush1.msra.mxu0 0.0
        %560 = vmatprep.subr.mxu0 0.0
        %561 = vmatpush1.msra.mxu0 0.0
        %562 = vmatprep.subr.mxu0 0.0
        %563 = vmatpush1.msra.mxu0 0.0
        %564 = vmatprep.subr.mxu0 0.0
        %565 = vmatpush1.msra.mxu0 0.0
        %566 = vmatprep.subr.mxu0 0.0
        %567 = vmatpush1.msra.mxu0 0.0
        %568 = vmatprep.subr.mxu0 0.0
        %569 = vmatpush1.msra.mxu0 0.0
        %570 = vmatprep.subr.mxu0 0.0
        %571 = vmatpush1.msra.mxu0 0.0
        %572 = vmatprep.subr.mxu0 0.0
        %573 = vmatpush1.msra.mxu0 0.0
        %574 = vmatprep.mubr.f32.mxu0 0.0
        %575 = vmatmul.mubr.f32.gmra.mrb[0].mxu0 %v506
        %v576 = vpop.f32.mrb[0].mxu0
        %v577 = vadd.f32 %v502, %v576
        %v578 = vpop.f32.mrb[0].mxu0
        %579 = vdwg.mxu0
        %v580 = vadd.f32 %v496, %v577
        %v581 = vmax.f32 %v580, 0.0
        %vm582 = vcmask 130048
        %583 = vst.msk [vmem:[%s272] sm:$0xff] %vm582, %v581
        %s584 = scalar_lea.vmem %s277, 4
        %v585 = vld [vmem:[%s584] sm:$0xf]
        %586 = vrot.lane.b32.xlu0 %v585, 16
        %v587 = vpop.permute.xlu0 %586
        %v588 = vsel %vm297, %v587, %v585
        %589 = vrot.lane.b32.xlu0 %v588, 16
        %v590 = vpop.permute.xlu0 %589
        %v591 = vsel %vm297, %v590, %v585
        %593 = vrot.lane.b32.xlu0 %v591, 113
        %v594 = vpop.permute.xlu0 %593
        %v596 = vsel %vm305, %v594, 0.0
        %597 = vrot.lane.b32.xlu0 %v591, 127
        %v598 = vpop.permute.xlu0 %597
        %v600 = vsel %vm312, %v598, 0.0
        %v602 = vrot.slane %v585, 4
        %v604 = vsel %vm320, %v596, %v602
        %v606 = vsel %vm320, %v600, 0
        %608 = vmatprep.subr.mxu0 0.0
        %609 = vmatpush1.msra.mxu0 %v604
        %610 = vmatprep.subr.mxu0 0.0
        %611 = vmatpush1.msra.mxu0 %v606
        %612 = vmatprep.subr.mxu0 0.0
        %613 = vmatpush1.msra.mxu0 0.0
        %614 = vmatprep.subr.mxu0 0.0
        %615 = vmatpush1.msra.mxu0 0.0
        %616 = vmatprep.subr.mxu0 0.0
        %617 = vmatpush1.msra.mxu0 0.0
        %618 = vmatprep.subr.mxu0 0.0
        %619 = vmatpush1.msra.mxu0 0.0
        %620 = vmatprep.subr.mxu0 0.0
        %621 = vmatpush1.msra.mxu0 0.0
        %622 = vmatprep.subr.mxu0 0.0
        %623 = vmatpush1.msra.mxu0 0.0
        %624 = vmatprep.subr.mxu0 0.0
        %625 = vmatpush1.msra.mxu0 0.0
        %626 = vmatprep.subr.mxu0 0.0
        %627 = vmatpush1.msra.mxu0 0.0
        %628 = vmatprep.subr.mxu0 0.0
        %629 = vmatpush1.msra.mxu0 0.0
        %630 = vmatprep.subr.mxu0 0.0
        %631 = vmatpush1.msra.mxu0 0.0
        %632 = vmatprep.subr.mxu0 0.0
        %633 = vmatpush1.msra.mxu0 0.0
        %634 = vmatprep.subr.mxu0 0.0
        %635 = vmatpush1.msra.mxu0 0.0
        %636 = vmatprep.subr.mxu0 0.0
        %637 = vmatpush1.msra.mxu0 0.0
        %638 = vmatprep.subr.mxu0 0.0
        %639 = vmatpush1.msra.mxu0 0.0
        %640 = vmatprep.subr.mxu0 0.0
        %641 = vmatpush1.msra.mxu0 0.0
        %642 = vmatprep.subr.mxu0 0.0
        %643 = vmatpush1.msra.mxu0 0.0
        %644 = vmatprep.subr.mxu0 0.0
        %645 = vmatpush1.msra.mxu0 0.0
        %646 = vmatprep.subr.mxu0 0.0
        %647 = vmatpush1.msra.mxu0 0.0
        %648 = vmatprep.subr.mxu0 0.0
        %649 = vmatpush1.msra.mxu0 0.0
        %650 = vmatprep.subr.mxu0 0.0
        %651 = vmatpush1.msra.mxu0 0.0
        %652 = vmatprep.subr.mxu0 0.0
        %653 = vmatpush1.msra.mxu0 0.0
        %654 = vmatprep.subr.mxu0 0.0
        %655 = vmatpush1.msra.mxu0 0.0
        %656 = vmatprep.subr.mxu0 0.0
        %657 = vmatpush1.msra.mxu0 0.0
        %658 = vmatprep.subr.mxu0 0.0
        %659 = vmatpush1.msra.mxu0 0.0
        %660 = vmatprep.subr.mxu0 0.0
        %661 = vmatpush1.msra.mxu0 0.0
        %662 = vmatprep.subr.mxu0 0.0
        %663 = vmatpush1.msra.mxu0 0.0
        %664 = vmatprep.subr.mxu0 0.0
        %665 = vmatpush1.msra.mxu0 0.0
        %666 = vmatprep.subr.mxu0 0.0
        %667 = vmatpush1.msra.mxu0 0.0
        %668 = vmatprep.subr.mxu0 0.0
        %669 = vmatpush1.msra.mxu0 0.0
        %670 = vmatprep.subr.mxu0 0.0
        %671 = vmatpush1.msra.mxu0 0.0
        %672 = vmatprep.mubr.f32.mxu0 0.0
        %673 = vmatmul.mubr.f32.gmra.mrb[0].mxu0 %v329
        %v674 = vpop.f32.mrb[0].mxu0
        %v675 = vadd.f32 %v325, %v674
        %v676 = vpop.f32.mrb[0].mxu0
        %677 = vdwg.mxu0
        %v678 = vmax.f32 %v675, 0.0
        %679 = vrot.lane.b32.xlu0 %v678, 16
        %v680 = vpop.permute.xlu0 %679
        %v681 = vsel %vm297, %v680, %v678
        %682 = vrot.lane.b32.xlu0 %v681, 16
        %v683 = vpop.permute.xlu0 %682
        %v684 = vsel %vm297, %v683, %v678
        %686 = vrot.lane.b32.xlu0 %v684, 113
        %v687 = vpop.permute.xlu0 %686
        %v689 = vsel %vm305, %v687, 0.0
        %690 = vrot.lane.b32.xlu0 %v684, 127
        %v691 = vpop.permute.xlu0 %690
        %v693 = vsel %vm312, %v691, 0.0
        %694 = vmatprep.subr.mxu0 0.0
        %695 = vmatpush1.msra.mxu0 %v689
        %696 = vmatprep.subr.mxu0 0.0
        %697 = vmatpush1.msra.mxu0 %v678
        %698 = vmatprep.subr.mxu0 0.0
        %699 = vmatpush1.msra.mxu0 %v693
        %700 = vmatprep.subr.mxu0 0.0
        %701 = vmatpush1.msra.mxu0 0.0
        %702 = vmatprep.subr.mxu0 0.0
        %703 = vmatpush1.msra.mxu0 0.0
        %704 = vmatprep.subr.mxu0 0.0
        %705 = vmatpush1.msra.mxu0 0.0
        %706 = vmatprep.subr.mxu0 0.0
        %707 = vmatpush1.msra.mxu0 0.0
        %708 = vmatprep.subr.mxu0 0.0
        %709 = vmatpush1.msra.mxu0 0.0
        %710 = vmatprep.subr.mxu0 0.0
        %711 = vmatpush1.msra.mxu0 0.0
        %712 = vmatprep.subr.mxu0 0.0
        %713 = vmatpush1.msra.mxu0 0.0
        %714 = vmatprep.subr.mxu0 0.0
        %715 = vmatpush1.msra.mxu0 0.0
        %716 = vmatprep.subr.mxu0 0.0
        %717 = vmatpush1.msra.mxu0 0.0
        %718 = vmatprep.subr.mxu0 0.0
        %719 = vmatpush1.msra.mxu0 0.0
        %720 = vmatprep.subr.mxu0 0.0
        %721 = vmatpush1.msra.mxu0 0.0
        %722 = vmatprep.subr.mxu0 0.0
        %723 = vmatpush1.msra.mxu0 0.0
        %724 = vmatprep.subr.mxu0 0.0
        %725 = vmatpush1.msra.mxu0 0.0
        %726 = vmatprep.subr.mxu0 0.0
        %727 = vmatpush1.msra.mxu0 0.0
        %728 = vmatprep.subr.mxu0 0.0
        %729 = vmatpush1.msra.mxu0 0.0
        %730 = vmatprep.subr.mxu0 0.0
        %731 = vmatpush1.msra.mxu0 0.0
        %732 = vmatprep.subr.mxu0 0.0
        %733 = vmatpush1.msra.mxu0 0.0
        %734 = vmatprep.subr.mxu0 0.0
        %735 = vmatpush1.msra.mxu0 0.0
        %736 = vmatprep.subr.mxu0 0.0
        %737 = vmatpush1.msra.mxu0 0.0
        %738 = vmatprep.subr.mxu0 0.0
        %739 = vmatpush1.msra.mxu0 0.0
        %740 = vmatprep.subr.mxu0 0.0
        %741 = vmatpush1.msra.mxu0 0.0
        %742 = vmatprep.subr.mxu0 0.0
        %743 = vmatpush1.msra.mxu0 0.0
        %744 = vmatprep.subr.mxu0 0.0
        %745 = vmatpush1.msra.mxu0 0.0
        %746 = vmatprep.subr.mxu0 0.0
        %747 = vmatpush1.msra.mxu0 0.0
        %748 = vmatprep.subr.mxu0 0.0
        %749 = vmatpush1.msra.mxu0 0.0
        %750 = vmatprep.subr.mxu0 0.0
        %751 = vmatpush1.msra.mxu0 0.0
        %752 = vmatprep.subr.mxu0 0.0
        %753 = vmatpush1.msra.mxu0 0.0
        %754 = vmatprep.subr.mxu0 0.0
        %755 = vmatpush1.msra.mxu0 0.0
        %756 = vmatprep.subr.mxu0 0.0
        %757 = vmatpush1.msra.mxu0 0.0
        %758 = vmatprep.mubr.f32.mxu0 0.0
        %759 = vmatmul.mubr.f32.gmra.mrb[0].mxu0 %v427
        %v760 = vpop.f32.mrb[0].mxu0
        %v761 = vadd.f32 %v423, %v760
        %v762 = vpop.f32.mrb[0].mxu0
        %763 = vdwg.mxu0
        %v764 = vsel %vm320, %v585, 0
        %766 = vmatprep.subr.mxu0 0.0
        %767 = vmatpush1.msra.mxu0 %v764
        %768 = vmatprep.subr.mxu0 0.0
        %769 = vmatpush1.msra.mxu0 0.0
        %770 = vmatprep.subr.mxu0 0.0
        %771 = vmatpush1.msra.mxu0 0.0
        %772 = vmatprep.subr.mxu0 0.0
        %773 = vmatpush1.msra.mxu0 0.0
        %774 = vmatprep.subr.mxu0 0.0
        %775 = vmatpush1.msra.mxu0 0.0
        %776 = vmatprep.subr.mxu0 0.0
        %777 = vmatpush1.msra.mxu0 0.0
        %778 = vmatprep.subr.mxu0 0.0
        %779 = vmatpush1.msra.mxu0 0.0
        %780 = vmatprep.subr.mxu0 0.0
        %781 = vmatpush1.msra.mxu0 0.0
        %782 = vmatprep.subr.mxu0 0.0
        %783 = vmatpush1.msra.mxu0 0.0
        %784 = vmatprep.subr.mxu0 0.0
        %785 = vmatpush1.msra.mxu0 0.0
        %786 = vmatprep.subr.mxu0 0.0
        %787 = vmatpush1.msra.mxu0 0.0
        %788 = vmatprep.subr.mxu0 0.0
        %789 = vmatpush1.msra.mxu0 0.0
        %790 = vmatprep.subr.mxu0 0.0
        %791 = vmatpush1.msra.mxu0 0.0
        %792 = vmatprep.subr.mxu0 0.0
        %793 = vmatpush1.msra.mxu0 0.0
        %794 = vmatprep.subr.mxu0 0.0
        %795 = vmatpush1.msra.mxu0 0.0
        %796 = vmatprep.subr.mxu0 0.0
        %797 = vmatpush1.msra.mxu0 0.0
        %798 = vmatprep.subr.mxu0 0.0
        %799 = vmatpush1.msra.mxu0 0.0
        %800 = vmatprep.subr.mxu0 0.0
        %801 = vmatpush1.msra.mxu0 0.0
        %802 = vmatprep.subr.mxu0 0.0
        %803 = vmatpush1.msra.mxu0 0.0
        %804 = vmatprep.subr.mxu0 0.0
        %805 = vmatpush1.msra.mxu0 0.0
        %806 = vmatprep.subr.mxu0 0.0
        %807 = vmatpush1.msra.mxu0 0.0
        %808 = vmatprep.subr.mxu0 0.0
        %809 = vmatpush1.msra.mxu0 0.0
        %810 = vmatprep.subr.mxu0 0.0
        %811 = vmatpush1.msra.mxu0 0.0
        %812 = vmatprep.subr.mxu0 0.0
        %813 = vmatpush1.msra.mxu0 0.0
        %814 = vmatprep.subr.mxu0 0.0
        %815 = vmatpush1.msra.mxu0 0.0
        %816 = vmatprep.subr.mxu0 0.0
        %817 = vmatpush1.msra.mxu0 0.0
        %818 = vmatprep.subr.mxu0 0.0
        %819 = vmatpush1.msra.mxu0 0.0
        %820 = vmatprep.subr.mxu0 0.0
        %821 = vmatpush1.msra.mxu0 0.0
        %822 = vmatprep.subr.mxu0 0.0
        %823 = vmatpush1.msra.mxu0 0.0
        %824 = vmatprep.subr.mxu0 0.0
        %825 = vmatpush1.msra.mxu0 0.0
        %826 = vmatprep.subr.mxu0 0.0
        %827 = vmatpush1.msra.mxu0 0.0
        %828 = vmatprep.subr.mxu0 0.0
        %829 = vmatpush1.msra.mxu0 0.0
        %830 = vmatprep.mubr.f32.mxu0 0.0
        %831 = vmatmul.mubr.f32.gmra.mrb[0].mxu0 %v506
        %v832 = vpop.f32.mrb[0].mxu0
        %v833 = vadd.f32 %v502, %v832
        %v834 = vpop.f32.mrb[0].mxu0
        %835 = vdwg.mxu0
        %v836 = vadd.f32 %v761, %v833
        %v837 = vmax.f32 %v836, 0.0
        %s838 = scalar_lea.vmem %s272, 8 [#allocation2]
        %839 = vst.msk [vmem:[%s838] sm:$0xff] %vm582, %v837
        %s840 = sand.u32 %s181, 1
        %s841 = scalar_lea.sflag [#allocation3], %s840
        %s842 = sand.u32 %s181, 1
        %s843 = smul.addr %s842, 16
        %s844 = scalar_lea.vmem [#allocation2], %s843
        // Predicated region
        $region49: #{tpu_custom_call.1} parent=47 // pred_check
          %p845 = pneg %p191
        $region50: #{tpu_custom_call.1} parent=47 // pred_check_branch
          %847 = sbr.rel (%p845) target = $region52
        $region51: #{tpu_custom_call.1} parent=47 // pred_region
          %s848 = smul.u32 2, %s21
          %s850 = ssub.s32 256, 256
          %851 = vsyncadd %s841, %s850
          %s852 = smul.addr %s848, 128
          %s853 = scalar_lea.hbm %s7, %s852
          %s854 = sshll.u32 %s844, 4
          %s855 = int_to_ptr.vmem [resolvable:$true] %s854
          %860 = dma.vmem_to_hbm [thread:$0]  %s855, 256, %s853, %s841, 128, 128, 8
        $region52: #{tpu_custom_call.1} parent=47 // pred_fallthru
          _
      $region48: #{tpu_custom_call.1} parent=5 // pred_fallthru
        _
      %p861 = scmp.le.s32.totalorder 2, %s16
      // Predicated region
      $region53: #{tpu_custom_call.1} parent=5 // pred_check
        %p862 = pneg %p861
      $region54: #{tpu_custom_call.1} parent=5 // pred_check_branch
        %864 = sbr.rel (%p862) target = $region56
      $region55: #{tpu_custom_call.1} parent=5 // pred_region
        %s865 = ssub.s32 %s16, 2
        // Predicated region
        $region57: #{tpu_custom_call.1} parent=55 // pred_check
          %p866 = pneg %p197
        $region58: #{tpu_custom_call.1} parent=55 // pred_check_branch
          %868 = sbr.rel (%p866) target = $region60
        $region59: #{tpu_custom_call.1} parent=55 // pred_region
          %s869 = sand.u32 %s182, 1
          %s870 = scalar_lea.sflag [#allocation3], %s869
          %s871 = sand.u32 %s182, 1
          %s872 = smul.addr %s871, 16
          %s873 = scalar_lea.vmem [#allocation2], %s872
          %874 = dma.done %s870, 256
        $region60: #{tpu_custom_call.1} parent=55 // pred_fallthru
          _
      $region56: #{tpu_custom_call.1} parent=5 // pred_fallthru
        _
    $region6: #{tpu_custom_call.1} parent=1 // loop_footer
      %s20 = sadd.s32 1, %s16
    $region7: #{tpu_custom_call.1} parent=1 // loop_footer_branch
      %15 = sbr.rel target = $region3
    $region8: #{tpu_custom_call.1} parent=1 // loop_exit
      _
    %875 = vsyncpa [#allocation3], 1
    %s876 = scalar_lea.sflag [#allocation3], 1
    %877 = vsyncpa %s876, 1

</llo_original>
